<compile_context>
chip_gen: v5e
topology: v5e:2x2
jax: 0.10.0
libtpu: 0.0.40
codegen_flags: <defaults>
</compile_context>

<pallas_src>
import numpy as np
import jax
import jax.numpy as jnp
from jax import lax
from jax.experimental import pallas as pl
from jax.experimental.pallas import tpu as pltpu


def _round_up(x, m):
    return (x + m - 1) // m * m


# ----------------------------- Pallas kernel ------------------------------- #
def _make_fused_conv_kernel(cin, ho, wo):
    """27-tap stride-2 3x3x3 conv over one (n, do) output depth plane.

    Kernel refs (in order):
      refs[0:12] : phase planes, each (Cin, RowsTot) bf16.
                   slot = (ph*2 + pw)*3 + kd holds the (H-parity ph, W-parity
                   pw) phase of padded input depth plane 2*do + kd.
      refs[12]   : folded weight (Cout, 27*Cin) bf16, VMEM resident.
      refs[13]   : output tile  (Cout, R) f32, R = Ho*(Wo+1) (the wo == Wo lane
                   of every row is junk and is sliced off outside the kernel).
      refs[14]   : VMEM scratch (27*Cin, R) bf16 -- the in-VMEM patch matrix.
    """
    w1 = wo + 1
    rows = ho * w1                     # R: output rows per step (incl. junk col)

    def kernel(*refs):
        planes = refs[:12]
        w_ref = refs[12]
        out_ref = refs[13]
        patches = refs[14]

        # Assemble the (27*Cin, R) patch matrix in VMEM.  Thanks to the parity
        # pre-split, every tap is a plain contiguous static slice (no strided
        # gathers in the kernel).  Fully rewritten each step.
        for kd in range(3):
            for kh in range(3):
                for kw in range(3):
                    ph, dh = kh & 1, kh >> 1
                    pw, dw = kw & 1, kw >> 1
                    slot = (ph * 2 + pw) * 3 + kd
                    base = dh * w1 + dw
                    tap = (kd * 3 + kh) * 3 + kw
                    patches[tap * cin:(tap + 1) * cin, :] = (
                        planes[slot][:, base:base + rows])

        # Single folded MXU matmul: (Cout, 27*Cin) @ (27*Cin, R) -> (Cout, R)
        # with f32 accumulation on the MXU; spatial dim is lane-dense.
        out_ref[...] = jnp.dot(
            w_ref[...], patches[...],
            preferred_element_type=jnp.float32).astype(out_ref.dtype)

    return kernel


def _fused_conv_pallas(phases, w_folded, *, n, do, ho, wo, cin, cout):
    """phases: (4, N, Dp, Cin, RowsTot) bf16; w_folded: (Cout, 27*Cin) bf16."""
    rows_tot = (ho + 2) * (wo + 1)
    r = ho * (wo + 1)
    k27 = 27 * cin
    assert phases.shape == (4, n, 2 * do + 1, cin, rows_tot)
    assert w_folded.shape == (cout, k27)

    def plane_spec(p, kd):
        return pl.BlockSpec(
            (None, None, None, cin, rows_tot),
            lambda i, j, p=p, kd=kd: (p, i, 2 * j + kd, 0, 0))

    # 12 slots = 4 (H,W) phases x 3 depth taps; each slot is one (Cin, RowsTot)
    # plane of the SAME phase array (aliased HBM operand, no data duplication).
    in_specs = [plane_spec(p, kd) for p in range(4) for kd in range(3)]
    # Folded weight: constant index map -> one DMA, stays VMEM resident.
    # TODO(synk): pipeline_mode=pl.Buffered(1) to drop the unused second buffer.
    in_specs.append(pl.BlockSpec((cout, k27), lambda i, j: (0, 0)))

    out_spec = pl.BlockSpec((None, None, cout, r), lambda i, j: (i, j, 0, 0))

    # Explicit scoped-VMEM limit computed from layout-padded block sizes
    # (bf16 packs 16 sublanes, lanes pad to 128), with headroom for relayout
    # temporaries; capped below v7x's 64 MiB physical VMEM.
    plane_blk = _round_up(cin, 16) * _round_up(rows_tot, 128) * 2
    w_blk = _round_up(cout, 16) * _round_up(k27, 128) * 2
    out_blk = _round_up(cout, 8) * _round_up(r, 128) * 4
    scratch_blk = _round_up(k27, 16) * _round_up(r, 128) * 2
    need = 2 * (12 * plane_blk + w_blk + out_blk) + scratch_blk
    vmem_limit = int(min(max(4 * need, 32 * 1024 * 1024), 56 * 1024 * 1024))

    cost = pl.CostEstimate(
        flops=2 * n * do * cout * k27 * r,
        transcendentals=0,
        bytes_accessed=int(n * do * 12 * cin * rows_tot * 2   # phase plane reads
                           + cout * k27 * 2                   # weight
                           + n * do * cout * r * 4),          # output writes
    )

    return pl.pallas_call(
        _make_fused_conv_kernel(cin, ho, wo),
        out_shape=jax.ShapeDtypeStruct((n, do, cout, r), jnp.float32),
        grid_spec=pltpu.PrefetchScalarGridSpec(
            num_scalar_prefetch=0,
            grid=(n, do),
            in_specs=in_specs,
            out_specs=out_spec,
            scratch_shapes=[pltpu.VMEM((k27, r), phases.dtype)],
        ),
        compiler_params=pltpu.CompilerParams(
            dimension_semantics=("parallel", "parallel"),
            vmem_limit_bytes=vmem_limit,
        ),
        cost_estimate=cost,
    )(*([phases] * 12), w_folded)


# ------------------------------- JAX wrapper -------------------------------- #
def downsampling_forward(x_ncdhw, weight_oidhw, *, stride=2, kernel_size=3,
                         padding=1, dropout_rate=0.0,
                         compute_dtype=jnp.bfloat16):
    """Pallas-backed DownSampling.forward: Conv3d(k=3, s=2, p=1, bias=False).

    Precision note: inputs are cast to bf16 (f32 accumulation on the MXU) --
    a documented choice that differs from the f32 PyTorch conv by O(1e-2).
    """
    if (stride, kernel_size, padding) != (2, 3, 1):
        raise NotImplementedError(
            "fused kernel is specialized to the VNet DownSampling config "
            "(kernel_size=3, stride=2, padding=1)")
    if dropout_rate > 0:
        # TODO(synk): implement F.dropout3d (per-channel dropout) with
        # pltpu.prng_seed / pltpu.prng_random_bits if a nonzero rate is needed.
        raise NotImplementedError("dropout_rate > 0 is not implemented")

    n, cin, d, h, w = x_ncdhw.shape
    cout = weight_oidhw.shape[0]
    do = (d - 1) // 2 + 1
    ho = (h - 1) // 2 + 1
    wo = (w - 1) // 2 + 1

    # Cast to bf16 FIRST so padding / phase-split move half the bytes.
    xb = x_ncdhw.astype(compute_dtype)

    # Pad so every (H,W) parity phase has exactly (Ho+2, Wo+1) rows/cols and
    # the depth axis covers planes 0 .. 2*Do.  Left pad of 1 is the conv
    # padding; the extra right-pad zeros only ever feed junk output lanes.
    dp = 2 * do + 1
    hp = 2 * (ho + 2)
    wp = 2 * (wo + 1)
    xp = jnp.pad(xb, ((0, 0), (0, 0),
                      (1, dp - 1 - d), (1, hp - 1 - h), (1, wp - 1 - w)))

    # (H, W) parity split: phase(ph, pw)[n, c, dz, i, j] = xp[n, c, dz, 2i+ph, 2j+pw].
    # Per-plane kernel layout is (Cin, rows) with rows = (Ho+2)*(Wo+1) lane-dense,
    # so every conv tap is a contiguous slice inside the kernel.
    rows_tot = (ho + 2) * (wo + 1)
    phase_list = [xp[:, :, :, ph::2, pw::2] for ph in (0, 1) for pw in (0, 1)]
    phases = jnp.stack(phase_list, axis=0)               # (4, N, Cin, Dp, Ho+2, Wo+1)
    phases = jnp.transpose(phases, (0, 1, 3, 2, 4, 5))   # (4, N, Dp, Cin, Ho+2, Wo+1)
    phases = phases.reshape(4, n, dp, cin, rows_tot)

    # Fold the 27 taps into the contraction dim (tap-major, Cin-minor) to match
    # the patch-matrix layout built inside the kernel.
    w_folded = jnp.transpose(weight_oidhw, (0, 2, 3, 4, 1)).reshape(cout, 27 * cin)
    w_folded = w_folded.astype(compute_dtype)

    out = _fused_conv_pallas(phases, w_folded, n=n, do=do, ho=ho, wo=wo,
                             cin=cin, cout=cout)          # (N, Do, Cout, Ho*(Wo+1)) f32

    # Drop the junk W lane and permute back to NCDHW (fused by XLA).
    out = out.reshape(n, do, cout, ho, wo + 1)[:, :, :, :, :wo]
    return jnp.transpose(out, (0, 2, 1, 3, 4))            # (N, Cout, Do, Ho, Wo)


# ------------------------------- demo / check ------------------------------- #
if __name__ == "__main__":
    key = jax.random.PRNGKey(0)
    kx, kw = jax.random.split(key)

    N, CIN, COUT = 2, 4, 8
    D = H = W = 16
    K, STRIDE, PAD = 3, 2, 1

    x = jax.random.normal(kx, (N, CIN, D, H, W), dtype=jnp.float32)
    fan_in = CIN * K * K * K
    weight = jax.random.normal(kw, (COUT, CIN, K, K, K),
                               dtype=jnp.float32) / np.sqrt(fan_in)

    fwd = jax.jit(downsampling_forward)
    out = jax.block_until_ready(fwd(x, weight))

    # Reference: XLA's native 3D conv with the same bf16 inputs / f32 accumulation.
    ref = lax.conv_general_dilated(
        x.astype(jnp.bfloat16), weight.astype(jnp.bfloat16),
        window_strides=(STRIDE, STRIDE, STRIDE),
        padding=[(PAD, PAD)] * 3,
        dimension_numbers=("NCDHW", "OIDHW", "NCDHW"),
        preferred_element_type=jnp.float32,
    )
    ref = jax.block_until_ready(ref)

    assert out.shape == ref.shape, (out.shape, ref.shape)
    np.testing.assert_allclose(np.asarray(out), np.asarray(ref),
                               atol=1e-2, rtol=1e-2)
    print("KERNEL_OK")
</pallas_src>

<mosaic_0001>
module attributes {stable_mosaic.version = 11 : i64} {
  func.func @kernel(%arg0: i32, %arg1: i32, %arg2: memref<1x1x1x4x90xbf16, #tpu.memory_space<vmem>>, %arg3: memref<1x1x1x4x90xbf16, #tpu.memory_space<vmem>>, %arg4: memref<1x1x1x4x90xbf16, #tpu.memory_space<vmem>>, %arg5: memref<1x1x1x4x90xbf16, #tpu.memory_space<vmem>>, %arg6: memref<1x1x1x4x90xbf16, #tpu.memory_space<vmem>>, %arg7: memref<1x1x1x4x90xbf16, #tpu.memory_space<vmem>>, %arg8: memref<1x1x1x4x90xbf16, #tpu.memory_space<vmem>>, %arg9: memref<1x1x1x4x90xbf16, #tpu.memory_space<vmem>>, %arg10: memref<1x1x1x4x90xbf16, #tpu.memory_space<vmem>>, %arg11: memref<1x1x1x4x90xbf16, #tpu.memory_space<vmem>>, %arg12: memref<1x1x1x4x90xbf16, #tpu.memory_space<vmem>>, %arg13: memref<1x1x1x4x90xbf16, #tpu.memory_space<vmem>>, %arg14: memref<8x108xbf16, #tpu.memory_space<vmem>>, %arg15: memref<1x1x8x72xf32, #tpu.memory_space<vmem>>, %arg16: memref<108x72xbf16, #tpu.memory_space<vmem>>) attributes {dimension_semantics = [#tpu.dimension_semantics<parallel>, #tpu.dimension_semantics<parallel>], iteration_bounds = array<i64: 2, 8>, scalar_prefetch = 0 : i64, scratch_operands = 1 : i64, tpu.core_type = #tpu.core_type<tc>, window_params = [{transform_indices = @transform_0, window_bounds = array<i64: 1, 1, 1, 4, 90>}, {transform_indices = @transform_1, window_bounds = array<i64: 1, 1, 1, 4, 90>}, {transform_indices = @transform_2, window_bounds = array<i64: 1, 1, 1, 4, 90>}, {transform_indices = @transform_3, window_bounds = array<i64: 1, 1, 1, 4, 90>}, {transform_indices = @transform_4, window_bounds = array<i64: 1, 1, 1, 4, 90>}, {transform_indices = @transform_5, window_bounds = array<i64: 1, 1, 1, 4, 90>}, {transform_indices = @transform_6, window_bounds = array<i64: 1, 1, 1, 4, 90>}, {transform_indices = @transform_7, window_bounds = array<i64: 1, 1, 1, 4, 90>}, {transform_indices = @transform_8, window_bounds = array<i64: 1, 1, 1, 4, 90>}, {transform_indices = @transform_9, window_bounds = array<i64: 1, 1, 1, 4, 90>}, {transform_indices = @transform_10, window_bounds = array<i64: 1, 1, 1, 4, 90>}, {transform_indices = @transform_11, window_bounds = array<i64: 1, 1, 1, 4, 90>}, {pipeline_mode = #tpu.pipeline_mode<synchronous>, transform_indices = @transform_12, window_bounds = array<i64: 8, 108>}, {transform_indices = @transform_13, window_bounds = array<i64: 1, 1, 8, 72>}]} {
    %c0 = arith.constant 0 : index
    %c0_0 = arith.constant 0 : index
    %c0_1 = arith.constant 0 : index
    %c0_2 = arith.constant 0 : index
    %c0_3 = arith.constant 0 : index
    %0 = vector.load %arg2[%c0, %c0_0, %c0_1, %c0_2, %c0_3] : memref<1x1x1x4x90xbf16, #tpu.memory_space<vmem>>, vector<1x1x1x4x72xbf16>
    %1 = vector.shape_cast %0 : vector<1x1x1x4x72xbf16> to vector<4x72xbf16>
    %c0_4 = arith.constant 0 : index
    %c0_5 = arith.constant 0 : index
    %2 = vector.load %arg16[%c0_4, %c0_5] : memref<108x72xbf16, #tpu.memory_space<vmem>>, vector<4x72xbf16>
    tpu.vector_store %arg16[%c0_4, %c0_5], %1 {strides = array<i32>} : memref<108x72xbf16, #tpu.memory_space<vmem>>, vector<4x72xbf16>,
    %c0_6 = arith.constant 0 : index
    %c0_7 = arith.constant 0 : index
    %c0_8 = arith.constant 0 : index
    %c0_9 = arith.constant 0 : index
    %c0_10 = arith.constant 0 : index
    %3 = vector.load %arg5[%c0_6, %c0_7, %c0_8, %c0_9, %c0_10] : memref<1x1x1x4x90xbf16, #tpu.memory_space<vmem>>, vector<1x1x1x4x72xbf16>
    %4 = vector.shape_cast %3 : vector<1x1x1x4x72xbf16> to vector<4x72xbf16>
    %c4 = arith.constant 4 : index
    %c0_11 = arith.constant 0 : index
    %5 = vector.load %arg16[%c4, %c0_11] : memref<108x72xbf16, #tpu.memory_space<vmem>>, vector<4x72xbf16>
    tpu.vector_store %arg16[%c4, %c0_11], %4 {strides = array<i32>} : memref<108x72xbf16, #tpu.memory_space<vmem>>, vector<4x72xbf16>,
    %c0_12 = arith.constant 0 : index
    %c0_13 = arith.constant 0 : index
    %c0_14 = arith.constant 0 : index
    %c0_15 = arith.constant 0 : index
    %c1 = arith.constant 1 : index
    %6 = vector.load %arg2[%c0_12, %c0_13, %c0_14, %c0_15, %c1] : memref<1x1x1x4x90xbf16, #tpu.memory_space<vmem>>, vector<1x1x1x4x72xbf16>
    %7 = vector.shape_cast %6 : vector<1x1x1x4x72xbf16> to vector<4x72xbf16>
    %c8 = arith.constant 8 : index
    %c0_16 = arith.constant 0 : index
    %8 = vector.load %arg16[%c8, %c0_16] : memref<108x72xbf16, #tpu.memory_space<vmem>>, vector<4x72xbf16>
    tpu.vector_store %arg16[%c8, %c0_16], %7 {strides = array<i32>} : memref<108x72xbf16, #tpu.memory_space<vmem>>, vector<4x72xbf16>,
    %c0_17 = arith.constant 0 : index
    %c0_18 = arith.constant 0 : index
    %c0_19 = arith.constant 0 : index
    %c0_20 = arith.constant 0 : index
    %c0_21 = arith.constant 0 : index
    %9 = vector.load %arg8[%c0_17, %c0_18, %c0_19, %c0_20, %c0_21] : memref<1x1x1x4x90xbf16, #tpu.memory_space<vmem>>, vector<1x1x1x4x72xbf16>
    %10 = vector.shape_cast %9 : vector<1x1x1x4x72xbf16> to vector<4x72xbf16>
    %c12 = arith.constant 12 : index
    %c0_22 = arith.constant 0 : index
    %11 = vector.load %arg16[%c12, %c0_22] : memref<108x72xbf16, #tpu.memory_space<vmem>>, vector<4x72xbf16>
    tpu.vector_store %arg16[%c12, %c0_22], %10 {strides = array<i32>} : memref<108x72xbf16, #tpu.memory_space<vmem>>, vector<4x72xbf16>,
    %c0_23 = arith.constant 0 : index
    %c0_24 = arith.constant 0 : index
    %c0_25 = arith.constant 0 : index
    %c0_26 = arith.constant 0 : index
    %c0_27 = arith.constant 0 : index
    %12 = vector.load %arg11[%c0_23, %c0_24, %c0_25, %c0_26, %c0_27] : memref<1x1x1x4x90xbf16, #tpu.memory_space<vmem>>, vector<1x1x1x4x72xbf16>
    %13 = vector.shape_cast %12 : vector<1x1x1x4x72xbf16> to vector<4x72xbf16>
    %c16 = arith.constant 16 : index
    %c0_28 = arith.constant 0 : index
    %14 = vector.load %arg16[%c16, %c0_28] : memref<108x72xbf16, #tpu.memory_space<vmem>>, vector<4x72xbf16>
    tpu.vector_store %arg16[%c16, %c0_28], %13 {strides = array<i32>} : memref<108x72xbf16, #tpu.memory_space<vmem>>, vector<4x72xbf16>,
    %c0_29 = arith.constant 0 : index
    %c0_30 = arith.constant 0 : index
    %c0_31 = arith.constant 0 : index
    %c0_32 = arith.constant 0 : index
    %c1_33 = arith.constant 1 : index
    %15 = vector.load %arg8[%c0_29, %c0_30, %c0_31, %c0_32, %c1_33] : memref<1x1x1x4x90xbf16, #tpu.memory_space<vmem>>, vector<1x1x1x4x72xbf16>
    %16 = vector.shape_cast %15 : vector<1x1x1x4x72xbf16> to vector<4x72xbf16>
    %c20 = arith.constant 20 : index
    %c0_34 = arith.constant 0 : index
    %17 = vector.load %arg16[%c20, %c0_34] : memref<108x72xbf16, #tpu.memory_space<vmem>>, vector<4x72xbf16>
    tpu.vector_store %arg16[%c20, %c0_34], %16 {strides = array<i32>} : memref<108x72xbf16, #tpu.memory_space<vmem>>, vector<4x72xbf16>,
    %c0_35 = arith.constant 0 : index
    %c0_36 = arith.constant 0 : index
    %c0_37 = arith.constant 0 : index
    %c0_38 = arith.constant 0 : index
    %c9 = arith.constant 9 : index
    %18 = vector.load %arg2[%c0_35, %c0_36, %c0_37, %c0_38, %c9] : memref<1x1x1x4x90xbf16, #tpu.memory_space<vmem>>, vector<1x1x1x4x72xbf16>
    %19 = vector.shape_cast %18 : vector<1x1x1x4x72xbf16> to vector<4x72xbf16>
    %c24 = arith.constant 24 : index
    %c0_39 = arith.constant 0 : index
    %20 = vector.load %arg16[%c24, %c0_39] : memref<108x72xbf16, #tpu.memory_space<vmem>>, vector<4x72xbf16>
    tpu.vector_store %arg16[%c24, %c0_39], %19 {strides = array<i32>} : memref<108x72xbf16, #tpu.memory_space<vmem>>, vector<4x72xbf16>,
    %c0_40 = arith.constant 0 : index
    %c0_41 = arith.constant 0 : index
    %c0_42 = arith.constant 0 : index
    %c0_43 = arith.constant 0 : index
    %c9_44 = arith.constant 9 : index
    %21 = vector.load %arg5[%c0_40, %c0_41, %c0_42, %c0_43, %c9_44] : memref<1x1x1x4x90xbf16, #tpu.memory_space<vmem>>, vector<1x1x1x4x72xbf16>
    %22 = vector.shape_cast %21 : vector<1x1x1x4x72xbf16> to vector<4x72xbf16>
    %c28 = arith.constant 28 : index
    %c0_45 = arith.constant 0 : index
    %23 = vector.load %arg16[%c28, %c0_45] : memref<108x72xbf16, #tpu.memory_space<vmem>>, vector<4x72xbf16>
    tpu.vector_store %arg16[%c28, %c0_45], %22 {strides = array<i32>} : memref<108x72xbf16, #tpu.memory_space<vmem>>, vector<4x72xbf16>,
    %c0_46 = arith.constant 0 : index
    %c0_47 = arith.constant 0 : index
    %c0_48 = arith.constant 0 : index
    %c0_49 = arith.constant 0 : index
    %c10 = arith.constant 10 : index
    %24 = vector.load %arg2[%c0_46, %c0_47, %c0_48, %c0_49, %c10] : memref<1x1x1x4x90xbf16, #tpu.memory_space<vmem>>, vector<1x1x1x4x72xbf16>
    %25 = vector.shape_cast %24 : vector<1x1x1x4x72xbf16> to vector<4x72xbf16>
    %c32 = arith.constant 32 : index
    %c0_50 = arith.constant 0 : index
    %26 = vector.load %arg16[%c32, %c0_50] : memref<108x72xbf16, #tpu.memory_space<vmem>>, vector<4x72xbf16>
    tpu.vector_store %arg16[%c32, %c0_50], %25 {strides = array<i32>} : memref<108x72xbf16, #tpu.memory_space<vmem>>, vector<4x72xbf16>,
    %c0_51 = arith.constant 0 : index
    %c0_52 = arith.constant 0 : index
    %c0_53 = arith.constant 0 : index
    %c0_54 = arith.constant 0 : index
    %c0_55 = arith.constant 0 : index
    %27 = vector.load %arg3[%c0_51, %c0_52, %c0_53, %c0_54, %c0_55] : memref<1x1x1x4x90xbf16, #tpu.memory_space<vmem>>, vector<1x1x1x4x72xbf16>
    %28 = vector.shape_cast %27 : vector<1x1x1x4x72xbf16> to vector<4x72xbf16>
    %c36 = arith.constant 36 : index
    %c0_56 = arith.constant 0 : index
    %29 = vector.load %arg16[%c36, %c0_56] : memref<108x72xbf16, #tpu.memory_space<vmem>>, vector<4x72xbf16>
    tpu.vector_store %arg16[%c36, %c0_56], %28 {strides = array<i32>} : memref<108x72xbf16, #tpu.memory_space<vmem>>, vector<4x72xbf16>,
    %c0_57 = arith.constant 0 : index
    %c0_58 = arith.constant 0 : index
    %c0_59 = arith.constant 0 : index
    %c0_60 = arith.constant 0 : index
    %c0_61 = arith.constant 0 : index
    %30 = vector.load %arg6[%c0_57, %c0_58, %c0_59, %c0_60, %c0_61] : memref<1x1x1x4x90xbf16, #tpu.memory_space<vmem>>, vector<1x1x1x4x72xbf16>
    %31 = vector.shape_cast %30 : vector<1x1x1x4x72xbf16> to vector<4x72xbf16>
    %c40 = arith.constant 40 : index
    %c0_62 = arith.constant 0 : index
    %32 = vector.load %arg16[%c40, %c0_62] : memref<108x72xbf16, #tpu.memory_space<vmem>>, vector<4x72xbf16>
    tpu.vector_store %arg16[%c40, %c0_62], %31 {strides = array<i32>} : memref<108x72xbf16, #tpu.memory_space<vmem>>, vector<4x72xbf16>,
    %c0_63 = arith.constant 0 : index
    %c0_64 = arith.constant 0 : index
    %c0_65 = arith.constant 0 : index
    %c0_66 = arith.constant 0 : index
    %c1_67 = arith.constant 1 : index
    %33 = vector.load %arg3[%c0_63, %c0_64, %c0_65, %c0_66, %c1_67] : memref<1x1x1x4x90xbf16, #tpu.memory_space<vmem>>, vector<1x1x1x4x72xbf16>
    %34 = vector.shape_cast %33 : vector<1x1x1x4x72xbf16> to vector<4x72xbf16>
    %c44 = arith.constant 44 : index
    %c0_68 = arith.constant 0 : index
    %35 = vector.load %arg16[%c44, %c0_68] : memref<108x72xbf16, #tpu.memory_space<vmem>>, vector<4x72xbf16>
    tpu.vector_store %arg16[%c44, %c0_68], %34 {strides = array<i32>} : memref<108x72xbf16, #tpu.memory_space<vmem>>, vector<4x72xbf16>,
    %c0_69 = arith.constant 0 : index
    %c0_70 = arith.constant 0 : index
    %c0_71 = arith.constant 0 : index
    %c0_72 = arith.constant 0 : index
    %c0_73 = arith.constant 0 : index
    %36 = vector.load %arg9[%c0_69, %c0_70, %c0_71, %c0_72, %c0_73] : memref<1x1x1x4x90xbf16, #tpu.memory_space<vmem>>, vector<1x1x1x4x72xbf16>
    %37 = vector.shape_cast %36 : vector<1x1x1x4x72xbf16> to vector<4x72xbf16>
    %c48 = arith.constant 48 : index
    %c0_74 = arith.constant 0 : index
    %38 = vector.load %arg16[%c48, %c0_74] : memref<108x72xbf16, #tpu.memory_space<vmem>>, vector<4x72xbf16>
    tpu.vector_store %arg16[%c48, %c0_74], %37 {strides = array<i32>} : memref<108x72xbf16, #tpu.memory_space<vmem>>, vector<4x72xbf16>,
    %c0_75 = arith.constant 0 : index
    %c0_76 = arith.constant 0 : index
    %c0_77 = arith.constant 0 : index
    %c0_78 = arith.constant 0 : index
    %c0_79 = arith.constant 0 : index
    %39 = vector.load %arg12[%c0_75, %c0_76, %c0_77, %c0_78, %c0_79] : memref<1x1x1x4x90xbf16, #tpu.memory_space<vmem>>, vector<1x1x1x4x72xbf16>
    %40 = vector.shape_cast %39 : vector<1x1x1x4x72xbf16> to vector<4x72xbf16>
    %c52 = arith.constant 52 : index
    %c0_80 = arith.constant 0 : index
    %41 = vector.load %arg16[%c52, %c0_80] : memref<108x72xbf16, #tpu.memory_space<vmem>>, vector<4x72xbf16>
    tpu.vector_store %arg16[%c52, %c0_80], %40 {strides = array<i32>} : memref<108x72xbf16, #tpu.memory_space<vmem>>, vector<4x72xbf16>,
    %c0_81 = arith.constant 0 : index
    %c0_82 = arith.constant 0 : index
    %c0_83 = arith.constant 0 : index
    %c0_84 = arith.constant 0 : index
    %c1_85 = arith.constant 1 : index
    %42 = vector.load %arg9[%c0_81, %c0_82, %c0_83, %c0_84, %c1_85] : memref<1x1x1x4x90xbf16, #tpu.memory_space<vmem>>, vector<1x1x1x4x72xbf16>
    %43 = vector.shape_cast %42 : vector<1x1x1x4x72xbf16> to vector<4x72xbf16>
    %c56 = arith.constant 56 : index
    %c0_86 = arith.constant 0 : index
    %44 = vector.load %arg16[%c56, %c0_86] : memref<108x72xbf16, #tpu.memory_space<vmem>>, vector<4x72xbf16>
    tpu.vector_store %arg16[%c56, %c0_86], %43 {strides = array<i32>} : memref<108x72xbf16, #tpu.memory_space<vmem>>, vector<4x72xbf16>,
    %c0_87 = arith.constant 0 : index
    %c0_88 = arith.constant 0 : index
    %c0_89 = arith.constant 0 : index
    %c0_90 = arith.constant 0 : index
    %c9_91 = arith.constant 9 : index
    %45 = vector.load %arg3[%c0_87, %c0_88, %c0_89, %c0_90, %c9_91] : memref<1x1x1x4x90xbf16, #tpu.memory_space<vmem>>, vector<1x1x1x4x72xbf16>
    %46 = vector.shape_cast %45 : vector<1x1x1x4x72xbf16> to vector<4x72xbf16>
    %c60 = arith.constant 60 : index
    %c0_92 = arith.constant 0 : index
    %47 = vector.load %arg16[%c60, %c0_92] : memref<108x72xbf16, #tpu.memory_space<vmem>>, vector<4x72xbf16>
    tpu.vector_store %arg16[%c60, %c0_92], %46 {strides = array<i32>} : memref<108x72xbf16, #tpu.memory_space<vmem>>, vector<4x72xbf16>,
    %c0_93 = arith.constant 0 : index
    %c0_94 = arith.constant 0 : index
    %c0_95 = arith.constant 0 : index
    %c0_96 = arith.constant 0 : index
    %c9_97 = arith.constant 9 : index
    %48 = vector.load %arg6[%c0_93, %c0_94, %c0_95, %c0_96, %c9_97] : memref<1x1x1x4x90xbf16, #tpu.memory_space<vmem>>, vector<1x1x1x4x72xbf16>
    %49 = vector.shape_cast %48 : vector<1x1x1x4x72xbf16> to vector<4x72xbf16>
    %c64 = arith.constant 64 : index
    %c0_98 = arith.constant 0 : index
    %50 = vector.load %arg16[%c64, %c0_98] : memref<108x72xbf16, #tpu.memory_space<vmem>>, vector<4x72xbf16>
    tpu.vector_store %arg16[%c64, %c0_98], %49 {strides = array<i32>} : memref<108x72xbf16, #tpu.memory_space<vmem>>, vector<4x72xbf16>,
    %c0_99 = arith.constant 0 : index
    %c0_100 = arith.constant 0 : index
    %c0_101 = arith.constant 0 : index
    %c0_102 = arith.constant 0 : index
    %c10_103 = arith.constant 10 : index
    %51 = vector.load %arg3[%c0_99, %c0_100, %c0_101, %c0_102, %c10_103] : memref<1x1x1x4x90xbf16, #tpu.memory_space<vmem>>, vector<1x1x1x4x72xbf16>
    %52 = vector.shape_cast %51 : vector<1x1x1x4x72xbf16> to vector<4x72xbf16>
    %c68 = arith.constant 68 : index
    %c0_104 = arith.constant 0 : index
    %53 = vector.load %arg16[%c68, %c0_104] : memref<108x72xbf16, #tpu.memory_space<vmem>>, vector<4x72xbf16>
    tpu.vector_store %arg16[%c68, %c0_104], %52 {strides = array<i32>} : memref<108x72xbf16, #tpu.memory_space<vmem>>, vector<4x72xbf16>,
    %c0_105 = arith.constant 0 : index
    %c0_106 = arith.constant 0 : index
    %c0_107 = arith.constant 0 : index
    %c0_108 = arith.constant 0 : index
    %c0_109 = arith.constant 0 : index
    %54 = vector.load %arg4[%c0_105, %c0_106, %c0_107, %c0_108, %c0_109] : memref<1x1x1x4x90xbf16, #tpu.memory_space<vmem>>, vector<1x1x1x4x72xbf16>
    %55 = vector.shape_cast %54 : vector<1x1x1x4x72xbf16> to vector<4x72xbf16>
    %c72 = arith.constant 72 : index
    %c0_110 = arith.constant 0 : index
    %56 = vector.load %arg16[%c72, %c0_110] : memref<108x72xbf16, #tpu.memory_space<vmem>>, vector<4x72xbf16>
    tpu.vector_store %arg16[%c72, %c0_110], %55 {strides = array<i32>} : memref<108x72xbf16, #tpu.memory_space<vmem>>, vector<4x72xbf16>,
    %c0_111 = arith.constant 0 : index
    %c0_112 = arith.constant 0 : index
    %c0_113 = arith.constant 0 : index
    %c0_114 = arith.constant 0 : index
    %c0_115 = arith.constant 0 : index
    %57 = vector.load %arg7[%c0_111, %c0_112, %c0_113, %c0_114, %c0_115] : memref<1x1x1x4x90xbf16, #tpu.memory_space<vmem>>, vector<1x1x1x4x72xbf16>
    %58 = vector.shape_cast %57 : vector<1x1x1x4x72xbf16> to vector<4x72xbf16>
    %c76 = arith.constant 76 : index
    %c0_116 = arith.constant 0 : index
    %59 = vector.load %arg16[%c76, %c0_116] : memref<108x72xbf16, #tpu.memory_space<vmem>>, vector<4x72xbf16>
    tpu.vector_store %arg16[%c76, %c0_116], %58 {strides = array<i32>} : memref<108x72xbf16, #tpu.memory_space<vmem>>, vector<4x72xbf16>,
    %c0_117 = arith.constant 0 : index
    %c0_118 = arith.constant 0 : index
    %c0_119 = arith.constant 0 : index
    %c0_120 = arith.constant 0 : index
    %c1_121 = arith.constant 1 : index
    %60 = vector.load %arg4[%c0_117, %c0_118, %c0_119, %c0_120, %c1_121] : memref<1x1x1x4x90xbf16, #tpu.memory_space<vmem>>, vector<1x1x1x4x72xbf16>
    %61 = vector.shape_cast %60 : vector<1x1x1x4x72xbf16> to vector<4x72xbf16>
    %c80 = arith.constant 80 : index
    %c0_122 = arith.constant 0 : index
    %62 = vector.load %arg16[%c80, %c0_122] : memref<108x72xbf16, #tpu.memory_space<vmem>>, vector<4x72xbf16>
    tpu.vector_store %arg16[%c80, %c0_122], %61 {strides = array<i32>} : memref<108x72xbf16, #tpu.memory_space<vmem>>, vector<4x72xbf16>,
    %c0_123 = arith.constant 0 : index
    %c0_124 = arith.constant 0 : index
    %c0_125 = arith.constant 0 : index
    %c0_126 = arith.constant 0 : index
    %c0_127 = arith.constant 0 : index
    %63 = vector.load %arg10[%c0_123, %c0_124, %c0_125, %c0_126, %c0_127] : memref<1x1x1x4x90xbf16, #tpu.memory_space<vmem>>, vector<1x1x1x4x72xbf16>
    %64 = vector.shape_cast %63 : vector<1x1x1x4x72xbf16> to vector<4x72xbf16>
    %c84 = arith.constant 84 : index
    %c0_128 = arith.constant 0 : index
    %65 = vector.load %arg16[%c84, %c0_128] : memref<108x72xbf16, #tpu.memory_space<vmem>>, vector<4x72xbf16>
    tpu.vector_store %arg16[%c84, %c0_128], %64 {strides = array<i32>} : memref<108x72xbf16, #tpu.memory_space<vmem>>, vector<4x72xbf16>,
    %c0_129 = arith.constant 0 : index
    %c0_130 = arith.constant 0 : index
    %c0_131 = arith.constant 0 : index
    %c0_132 = arith.constant 0 : index
    %c0_133 = arith.constant 0 : index
    %66 = vector.load %arg13[%c0_129, %c0_130, %c0_131, %c0_132, %c0_133] : memref<1x1x1x4x90xbf16, #tpu.memory_space<vmem>>, vector<1x1x1x4x72xbf16>
    %67 = vector.shape_cast %66 : vector<1x1x1x4x72xbf16> to vector<4x72xbf16>
    %c88 = arith.constant 88 : index
    %c0_134 = arith.constant 0 : index
    %68 = vector.load %arg16[%c88, %c0_134] : memref<108x72xbf16, #tpu.memory_space<vmem>>, vector<4x72xbf16>
    tpu.vector_store %arg16[%c88, %c0_134], %67 {strides = array<i32>} : memref<108x72xbf16, #tpu.memory_space<vmem>>, vector<4x72xbf16>,
    %c0_135 = arith.constant 0 : index
    %c0_136 = arith.constant 0 : index
    %c0_137 = arith.constant 0 : index
    %c0_138 = arith.constant 0 : index
    %c1_139 = arith.constant 1 : index
    %69 = vector.load %arg10[%c0_135, %c0_136, %c0_137, %c0_138, %c1_139] : memref<1x1x1x4x90xbf16, #tpu.memory_space<vmem>>, vector<1x1x1x4x72xbf16>
    %70 = vector.shape_cast %69 : vector<1x1x1x4x72xbf16> to vector<4x72xbf16>
    %c92 = arith.constant 92 : index
    %c0_140 = arith.constant 0 : index
    %71 = vector.load %arg16[%c92, %c0_140] : memref<108x72xbf16, #tpu.memory_space<vmem>>, vector<4x72xbf16>
    tpu.vector_store %arg16[%c92, %c0_140], %70 {strides = array<i32>} : memref<108x72xbf16, #tpu.memory_space<vmem>>, vector<4x72xbf16>,
    %c0_141 = arith.constant 0 : index
    %c0_142 = arith.constant 0 : index
    %c0_143 = arith.constant 0 : index
    %c0_144 = arith.constant 0 : index
    %c9_145 = arith.constant 9 : index
    %72 = vector.load %arg4[%c0_141, %c0_142, %c0_143, %c0_144, %c9_145] : memref<1x1x1x4x90xbf16, #tpu.memory_space<vmem>>, vector<1x1x1x4x72xbf16>
    %73 = vector.shape_cast %72 : vector<1x1x1x4x72xbf16> to vector<4x72xbf16>
    %c96 = arith.constant 96 : index
    %c0_146 = arith.constant 0 : index
    %74 = vector.load %arg16[%c96, %c0_146] : memref<108x72xbf16, #tpu.memory_space<vmem>>, vector<4x72xbf16>
    tpu.vector_store %arg16[%c96, %c0_146], %73 {strides = array<i32>} : memref<108x72xbf16, #tpu.memory_space<vmem>>, vector<4x72xbf16>,
    %c0_147 = arith.constant 0 : index
    %c0_148 = arith.constant 0 : index
    %c0_149 = arith.constant 0 : index
    %c0_150 = arith.constant 0 : index
    %c9_151 = arith.constant 9 : index
    %75 = vector.load %arg7[%c0_147, %c0_148, %c0_149, %c0_150, %c9_151] : memref<1x1x1x4x90xbf16, #tpu.memory_space<vmem>>, vector<1x1x1x4x72xbf16>
    %76 = vector.shape_cast %75 : vector<1x1x1x4x72xbf16> to vector<4x72xbf16>
    %c100 = arith.constant 100 : index
    %c0_152 = arith.constant 0 : index
    %77 = vector.load %arg16[%c100, %c0_152] : memref<108x72xbf16, #tpu.memory_space<vmem>>, vector<4x72xbf16>
    tpu.vector_store %arg16[%c100, %c0_152], %76 {strides = array<i32>} : memref<108x72xbf16, #tpu.memory_space<vmem>>, vector<4x72xbf16>,
    %c0_153 = arith.constant 0 : index
    %c0_154 = arith.constant 0 : index
    %c0_155 = arith.constant 0 : index
    %c0_156 = arith.constant 0 : index
    %c10_157 = arith.constant 10 : index
    %78 = vector.load %arg4[%c0_153, %c0_154, %c0_155, %c0_156, %c10_157] : memref<1x1x1x4x90xbf16, #tpu.memory_space<vmem>>, vector<1x1x1x4x72xbf16>
    %79 = vector.shape_cast %78 : vector<1x1x1x4x72xbf16> to vector<4x72xbf16>
    %c104 = arith.constant 104 : index
    %c0_158 = arith.constant 0 : index
    %80 = vector.load %arg16[%c104, %c0_158] : memref<108x72xbf16, #tpu.memory_space<vmem>>, vector<4x72xbf16>
    tpu.vector_store %arg16[%c104, %c0_158], %79 {strides = array<i32>} : memref<108x72xbf16, #tpu.memory_space<vmem>>, vector<4x72xbf16>,
    %c0_159 = arith.constant 0 : index
    %c0_160 = arith.constant 0 : index
    %81 = vector.load %arg14[%c0_159, %c0_160] : memref<8x108xbf16, #tpu.memory_space<vmem>>, vector<8x108xbf16>
    %c0_161 = arith.constant 0 : index
    %c0_162 = arith.constant 0 : index
    %82 = vector.load %arg16[%c0_161, %c0_162] : memref<108x72xbf16, #tpu.memory_space<vmem>>, vector<108x72xbf16>
    %cst = arith.constant dense<0.000000e+00> : vector<8x72xf32>
    %83 = tpu.matmul %81, %82, %cst {dimension_numbers = #tpu.dot_dimension_numbers<[1], [0], [0], [1], [0, 0, 1, 1], [], []>} : vector<8x108xbf16>, vector<108x72xbf16>, vector<8x72xf32> -> vector<8x72xf32>
    %c0_163 = arith.constant 0 : index
    %c0_164 = arith.constant 0 : index
    %c0_165 = arith.constant 0 : index
    %c0_166 = arith.constant 0 : index
    %84 = vector.load %arg15[%c0_163, %c0_164, %c0_165, %c0_166] : memref<1x1x8x72xf32, #tpu.memory_space<vmem>>, vector<1x1x8x72xf32>
    %85 = vector.shape_cast %84 : vector<1x1x8x72xf32> to vector<8x72xf32>
    %86 = vector.shape_cast %83 : vector<8x72xf32> to vector<1x1x8x72xf32>
    tpu.vector_store %arg15[%c0_163, %c0_164, %c0_165, %c0_166], %86 {strides = array<i32>} : memref<1x1x8x72xf32, #tpu.memory_space<vmem>>, vector<1x1x8x72xf32>,
    return
  }
  func.func @transform_0(%arg0: i32, %arg1: i32) -> (i32, i32, i32, i32, i32) {
    %c2_i32 = arith.constant 2 : i32
    %0 = arith.muli %c2_i32, %arg1 : i32
    %c0_i32 = arith.constant 0 : i32
    %1 = arith.addi %0, %c0_i32 : i32
    %c0_i32_0 = arith.constant 0 : i32
    %c0_i32_1 = arith.constant 0 : i32
    %c0_i32_2 = arith.constant 0 : i32
    %c0_i32_3 = arith.constant 0 : i32
    return %c0_i32_0, %arg0, %1, %c0_i32_1, %c0_i32_2 : i32, i32, i32, i32, i32
  }
  func.func @transform_1(%arg0: i32, %arg1: i32) -> (i32, i32, i32, i32, i32) {
    %c2_i32 = arith.constant 2 : i32
    %0 = arith.muli %c2_i32, %arg1 : i32
    %c1_i32 = arith.constant 1 : i32
    %1 = arith.addi %0, %c1_i32 : i32
    %c0_i32 = arith.constant 0 : i32
    %c0_i32_0 = arith.constant 0 : i32
    %c0_i32_1 = arith.constant 0 : i32
    %c0_i32_2 = arith.constant 0 : i32
    return %c0_i32, %arg0, %1, %c0_i32_0, %c0_i32_1 : i32, i32, i32, i32, i32
  }
  func.func @transform_2(%arg0: i32, %arg1: i32) -> (i32, i32, i32, i32, i32) {
    %c2_i32 = arith.constant 2 : i32
    %0 = arith.muli %c2_i32, %arg1 : i32
    %c2_i32_0 = arith.constant 2 : i32
    %1 = arith.addi %0, %c2_i32_0 : i32
    %c0_i32 = arith.constant 0 : i32
    %c0_i32_1 = arith.constant 0 : i32
    %c0_i32_2 = arith.constant 0 : i32
    %c0_i32_3 = arith.constant 0 : i32
    return %c0_i32, %arg0, %1, %c0_i32_1, %c0_i32_2 : i32, i32, i32, i32, i32
  }
  func.func @transform_3(%arg0: i32, %arg1: i32) -> (i32, i32, i32, i32, i32) {
    %c2_i32 = arith.constant 2 : i32
    %0 = arith.muli %c2_i32, %arg1 : i32
    %c0_i32 = arith.constant 0 : i32
    %1 = arith.addi %0, %c0_i32 : i32
    %c1_i32 = arith.constant 1 : i32
    %c0_i32_0 = arith.constant 0 : i32
    %c0_i32_1 = arith.constant 0 : i32
    %c0_i32_2 = arith.constant 0 : i32
    return %c1_i32, %arg0, %1, %c0_i32_0, %c0_i32_1 : i32, i32, i32, i32, i32
  }
  func.func @transform_4(%arg0: i32, %arg1: i32) -> (i32, i32, i32, i32, i32) {
    %c2_i32 = arith.constant 2 : i32
    %0 = arith.muli %c2_i32, %arg1 : i32
    %c1_i32 = arith.constant 1 : i32
    %1 = arith.addi %0, %c1_i32 : i32
    %c1_i32_0 = arith.constant 1 : i32
    %c0_i32 = arith.constant 0 : i32
    %c0_i32_1 = arith.constant 0 : i32
    %c0_i32_2 = arith.constant 0 : i32
    return %c1_i32_0, %arg0, %1, %c0_i32, %c0_i32_1 : i32, i32, i32, i32, i32
  }
  func.func @transform_5(%arg0: i32, %arg1: i32) -> (i32, i32, i32, i32, i32) {
    %c2_i32 = arith.constant 2 : i32
    %0 = arith.muli %c2_i32, %arg1 : i32
    %c2_i32_0 = arith.constant 2 : i32
    %1 = arith.addi %0, %c2_i32_0 : i32
    %c1_i32 = arith.constant 1 : i32
    %c0_i32 = arith.constant 0 : i32
    %c0_i32_1 = arith.constant 0 : i32
    %c0_i32_2 = arith.constant 0 : i32
    return %c1_i32, %arg0, %1, %c0_i32, %c0_i32_1 : i32, i32, i32, i32, i32
  }
  func.func @transform_6(%arg0: i32, %arg1: i32) -> (i32, i32, i32, i32, i32) {
    %c2_i32 = arith.constant 2 : i32
    %0 = arith.muli %c2_i32, %arg1 : i32
    %c0_i32 = arith.constant 0 : i32
    %1 = arith.addi %0, %c0_i32 : i32
    %c2_i32_0 = arith.constant 2 : i32
    %c0_i32_1 = arith.constant 0 : i32
    %c0_i32_2 = arith.constant 0 : i32
    %c0_i32_3 = arith.constant 0 : i32
    return %c2_i32_0, %arg0, %1, %c0_i32_1, %c0_i32_2 : i32, i32, i32, i32, i32
  }
  func.func @transform_7(%arg0: i32, %arg1: i32) -> (i32, i32, i32, i32, i32) {
    %c2_i32 = arith.constant 2 : i32
    %0 = arith.muli %c2_i32, %arg1 : i32
    %c1_i32 = arith.constant 1 : i32
    %1 = arith.addi %0, %c1_i32 : i32
    %c2_i32_0 = arith.constant 2 : i32
    %c0_i32 = arith.constant 0 : i32
    %c0_i32_1 = arith.constant 0 : i32
    %c0_i32_2 = arith.constant 0 : i32
    return %c2_i32_0, %arg0, %1, %c0_i32, %c0_i32_1 : i32, i32, i32, i32, i32
  }
  func.func @transform_8(%arg0: i32, %arg1: i32) -> (i32, i32, i32, i32, i32) {
    %c2_i32 = arith.constant 2 : i32
    %0 = arith.muli %c2_i32, %arg1 : i32
    %c2_i32_0 = arith.constant 2 : i32
    %1 = arith.addi %0, %c2_i32_0 : i32
    %c2_i32_1 = arith.constant 2 : i32
    %c0_i32 = arith.constant 0 : i32
    %c0_i32_2 = arith.constant 0 : i32
    %c0_i32_3 = arith.constant 0 : i32
    return %c2_i32_1, %arg0, %1, %c0_i32, %c0_i32_2 : i32, i32, i32, i32, i32
  }
  func.func @transform_9(%arg0: i32, %arg1: i32) -> (i32, i32, i32, i32, i32) {
    %c2_i32 = arith.constant 2 : i32
    %0 = arith.muli %c2_i32, %arg1 : i32
    %c0_i32 = arith.constant 0 : i32
    %1 = arith.addi %0, %c0_i32 : i32
    %c3_i32 = arith.constant 3 : i32
    %c0_i32_0 = arith.constant 0 : i32
    %c0_i32_1 = arith.constant 0 : i32
    %c0_i32_2 = arith.constant 0 : i32
    return %c3_i32, %arg0, %1, %c0_i32_0, %c0_i32_1 : i32, i32, i32, i32, i32
  }
  func.func @transform_10(%arg0: i32, %arg1: i32) -> (i32, i32, i32, i32, i32) {
    %c2_i32 = arith.constant 2 : i32
    %0 = arith.muli %c2_i32, %arg1 : i32
    %c1_i32 = arith.constant 1 : i32
    %1 = arith.addi %0, %c1_i32 : i32
    %c3_i32 = arith.constant 3 : i32
    %c0_i32 = arith.constant 0 : i32
    %c0_i32_0 = arith.constant 0 : i32
    %c0_i32_1 = arith.constant 0 : i32
    return %c3_i32, %arg0, %1, %c0_i32, %c0_i32_0 : i32, i32, i32, i32, i32
  }
  func.func @transform_11(%arg0: i32, %arg1: i32) -> (i32, i32, i32, i32, i32) {
    %c2_i32 = arith.constant 2 : i32
    %0 = arith.muli %c2_i32, %arg1 : i32
    %c2_i32_0 = arith.constant 2 : i32
    %1 = arith.addi %0, %c2_i32_0 : i32
    %c3_i32 = arith.constant 3 : i32
    %c0_i32 = arith.constant 0 : i32
    %c0_i32_1 = arith.constant 0 : i32
    %c0_i32_2 = arith.constant 0 : i32
    return %c3_i32, %arg0, %1, %c0_i32, %c0_i32_1 : i32, i32, i32, i32, i32
  }
  func.func @transform_12(%arg0: i32, %arg1: i32) -> (i32, i32) {
    %c0_i32 = arith.constant 0 : i32
    %c0_i32_0 = arith.constant 0 : i32
    %c0_i32_1 = arith.constant 0 : i32
    return %c0_i32, %c0_i32_0 : i32, i32
  }
  func.func @transform_13(%arg0: i32, %arg1: i32) -> (i32, i32, i32, i32) {
    %c0_i32 = arith.constant 0 : i32
    %c0_i32_0 = arith.constant 0 : i32
    %c0_i32_1 = arith.constant 0 : i32
    return %arg0, %arg1, %c0_i32, %c0_i32_0 : i32, i32, i32, i32
  }
}

</mosaic_0001>

<llo_original>
// kernel: downsampling_forward.1
$region0: #{downsampling_forward.1}
  #allocation0 [shape = 'u32[]', space=smem, size = 0x4, offset = 0x4, fixed_abs, tag = 'smem constant byte address 0x4 - core index']
  #allocation1 [shape = 'u32[72,128]{1,0:T(1,128)}', space=vmem, size = 0x9000, scoped, tag = 'internal scratch']
  #allocation2 [shape = 'bf16[108,72]{1,0:T(8,128)(2,1)}', space=vmem, size = 0x7000, scoped, tag = 'scratch operand']
  %s0 = inlined_call_operand.vmem [shape: bf16[4,2,17,4,90], index: 0, kind: input, shape index: {}, may-alias: {0,1,2,3,4,5,6,7,8,9,10,11}]
  %s1 = inlined_call_operand.vmem [shape: bf16[4,2,17,4,90], index: 1, kind: input, shape index: {}, may-alias: {0,1,2,3,4,5,6,7,8,9,10,11}]
  %s2 = inlined_call_operand.vmem [shape: bf16[4,2,17,4,90], index: 2, kind: input, shape index: {}, may-alias: {0,1,2,3,4,5,6,7,8,9,10,11}]
  %s3 = inlined_call_operand.vmem [shape: bf16[4,2,17,4,90], index: 3, kind: input, shape index: {}, may-alias: {0,1,2,3,4,5,6,7,8,9,10,11}]
  %s4 = inlined_call_operand.vmem [shape: bf16[4,2,17,4,90], index: 4, kind: input, shape index: {}, may-alias: {0,1,2,3,4,5,6,7,8,9,10,11}]
  %s5 = inlined_call_operand.vmem [shape: bf16[4,2,17,4,90], index: 5, kind: input, shape index: {}, may-alias: {0,1,2,3,4,5,6,7,8,9,10,11}]
  %s6 = inlined_call_operand.vmem [shape: bf16[4,2,17,4,90], index: 6, kind: input, shape index: {}, may-alias: {0,1,2,3,4,5,6,7,8,9,10,11}]
  %s7 = inlined_call_operand.vmem [shape: bf16[4,2,17,4,90], index: 7, kind: input, shape index: {}, may-alias: {0,1,2,3,4,5,6,7,8,9,10,11}]
  %s8 = inlined_call_operand.vmem [shape: bf16[4,2,17,4,90], index: 8, kind: input, shape index: {}, may-alias: {0,1,2,3,4,5,6,7,8,9,10,11}]
  %s9 = inlined_call_operand.vmem [shape: bf16[4,2,17,4,90], index: 9, kind: input, shape index: {}, may-alias: {0,1,2,3,4,5,6,7,8,9,10,11}]
  %s10 = inlined_call_operand.vmem [shape: bf16[4,2,17,4,90], index: 10, kind: input, shape index: {}, may-alias: {0,1,2,3,4,5,6,7,8,9,10,11}]
  %s11 = inlined_call_operand.vmem [shape: bf16[4,2,17,4,90], index: 11, kind: input, shape index: {}, may-alias: {0,1,2,3,4,5,6,7,8,9,10,11}]
  %s12 = inlined_call_operand.vmem [shape: bf16[8,108], index: 12, kind: input, shape index: {}]
  %s13 = inlined_call_operand.vmem [shape: f32[2,8,8,72], index: 13, kind: output, shape index: {}]
  %s14 = sld [smem:[#allocation0]]
  $region85: #{downsampling_forward.1} parent=0
    _
  %s16 = ssub.s32 1, %s14
  %s17 = scalar_select 0, %s16, %s14
  loop: start=0, step=1, limit=18
  $region2: #{downsampling_forward.1} parent=0 // loop_pre_header
    _
  $region3: #{downsampling_forward.1} parent=0 // loop_header
    %s19 = sphi 0, %s23
    %p20 = scmp.ge.s32.totalorder %s19, 18
    %s26 = sphi 0, %s38
    %s27 = sphi 0, %s34
    %s28 = sphi 0, %s26
    %s29 = sphi 0, %s27
    %s30 = sphi 0, %s28
    %s31 = sphi 0, %s29
    %s45 = sphi 0, %s47
    %s48 = sphi 0, %s45
    %s49 = sphi 0, %s48
    %s65 = sphi 0, %s49
    %s77 = sphi 0, %s79
    %s80 = sphi 0, %s77
    %s81 = sphi 0, %s80
    %s97 = sphi 0, %s81
    %s109 = sphi 0, %s111
    %s112 = sphi 0, %s109
    %s113 = sphi 0, %s112
    %s129 = sphi 0, %s113
    %s139 = sphi 0, %s141
    %s142 = sphi 0, %s139
    %s143 = sphi 0, %s142
    %s159 = sphi 0, %s143
    %s171 = sphi 0, %s173
    %s174 = sphi 0, %s171
    %s175 = sphi 0, %s174
    %s191 = sphi 0, %s175
    %s203 = sphi 0, %s205
    %s206 = sphi 0, %s203
    %s207 = sphi 0, %s206
    %s223 = sphi 0, %s207
    %s233 = sphi 0, %s235
    %s236 = sphi 0, %s233
    %s237 = sphi 0, %s236
    %s253 = sphi 0, %s237
    %s265 = sphi 0, %s267
    %s268 = sphi 0, %s265
    %s269 = sphi 0, %s268
    %s285 = sphi 0, %s269
    %s297 = sphi 0, %s299
    %s300 = sphi 0, %s297
    %s301 = sphi 0, %s300
    %s317 = sphi 0, %s301
    %s327 = sphi 0, %s329
    %s330 = sphi 0, %s327
    %s331 = sphi 0, %s330
    %s347 = sphi 0, %s331
    %s359 = sphi 0, %s361
    %s362 = sphi 0, %s359
    %s363 = sphi 0, %s362
    %s379 = sphi 0, %s363
    %s391 = sphi 0, %s393
    %s394 = sphi 0, %s391
    %s395 = sphi 0, %s394
    %s411 = sphi 0, %s395
    %s415 = sphi 0, %s415
    %s417 = sphi 0, %s415
    %s418 = sphi 0, %s417
    %s432 = sphi 0, %s418
    %s440 = sphi 0, %s442
    %s443 = sphi 0, %s440
    %s444 = sphi 0, %s443
    %s460 = sphi 0, %s444
  $region4: #{downsampling_forward.1} parent=0 // loop_header_branch
    %22 = sbr.rel (%p20) target = $region8
  $region5: #{downsampling_forward.1} parent=0 // loop_body
    %s24 = ssub.s32 %s19, 1
    %s25 = ssub.s32 %s19, 2
    %s32 = sadd.s32 1, %s27
    %p33 = scmp.ge.s32.totalorder %s32, 8
    %s34 = scalar_select %p33, 0, %s32
    %s35 = sadd.s32 1, %s26
    %s36 = scalar_select %p33, %s35, %s26
    %p37 = scmp.ge.s32.totalorder %s36, 2
    %s38 = scalar_select %p37, 0, %s36
    %s39 = smul.u32 %s27, 2
    %s40 = smul.u32 %s34, 2
    %s41 = ssub.s32 %s26, %s38
    %s42 = ssub.s32 %s39, %s40
    %s43 = sor.u32 %s41, %s42
    %p44 = scmp.eq.s32.totalorder %s43, 0
    %s46 = sadd.s32 %s45, 1
    %s47 = scalar_select %p44, %s45, %s46
    %p50 = pneg %p44
    %p51 = scmp.eq.s32.totalorder %s19, 15
    %p52 = por %p50, %p51
    %p53 = scmp.ne.s32.totalorder %s45, %s48
    %p54 = scmp.eq.s32.totalorder %s19, 0
    %p55 = por %p53, %p54
    %p56 = scmp.ne.s32.totalorder %s45, %s48
    %p57 = scmp.eq.s32.totalorder %s24, 15
    %p58 = por %p56, %p57
    %p59 = scmp.ne.s32.totalorder %s48, %s49
    %p60 = scmp.eq.s32.totalorder %s24, 0
    %p61 = por %p59, %p60
    %p62 = scmp.ne.s32.totalorder %s48, %s49
    %p63 = scmp.eq.s32.totalorder %s25, 15
    %p64 = por %p62, %p63
    %p66 = scmp.ne.s32.totalorder %s49, %s65
    %p67 = scmp.eq.s32.totalorder %s25, 0
    %p68 = por %p66, %p67
    %s69 = smul.u32 %s27, 2
    %s70 = sadd.s32 %s69, 1
    %s71 = smul.u32 %s34, 2
    %s72 = sadd.s32 %s71, 1
    %s73 = ssub.s32 %s26, %s38
    %s74 = ssub.s32 %s70, %s72
    %s75 = sor.u32 %s73, %s74
    %p76 = scmp.eq.s32.totalorder %s75, 0
    %s78 = sadd.s32 %s77, 1
    %s79 = scalar_select %p76, %s77, %s78
    %p82 = pneg %p76
    %p83 = scmp.eq.s32.totalorder %s19, 15
    %p84 = por %p82, %p83
    %p85 = scmp.ne.s32.totalorder %s77, %s80
    %p86 = scmp.eq.s32.totalorder %s19, 0
    %p87 = por %p85, %p86
    %p88 = scmp.ne.s32.totalorder %s77, %s80
    %p89 = scmp.eq.s32.totalorder %s24, 15
    %p90 = por %p88, %p89
    %p91 = scmp.ne.s32.totalorder %s80, %s81
    %p92 = scmp.eq.s32.totalorder %s24, 0
    %p93 = por %p91, %p92
    %p94 = scmp.ne.s32.totalorder %s80, %s81
    %p95 = scmp.eq.s32.totalorder %s25, 15
    %p96 = por %p94, %p95
    %p98 = scmp.ne.s32.totalorder %s81, %s97
    %p99 = scmp.eq.s32.totalorder %s25, 0
    %p100 = por %p98, %p99
    %s101 = smul.u32 %s27, 2
    %s102 = sadd.s32 %s101, 2
    %s103 = smul.u32 %s34, 2
    %s104 = sadd.s32 %s103, 2
    %s105 = ssub.s32 %s26, %s38
    %s106 = ssub.s32 %s102, %s104
    %s107 = sor.u32 %s105, %s106
    %p108 = scmp.eq.s32.totalorder %s107, 0
    %s110 = sadd.s32 %s109, 1
    %s111 = scalar_select %p108, %s109, %s110
    %p114 = pneg %p108
    %p115 = scmp.eq.s32.totalorder %s19, 15
    %p116 = por %p114, %p115
    %p117 = scmp.ne.s32.totalorder %s109, %s112
    %p118 = scmp.eq.s32.totalorder %s19, 0
    %p119 = por %p117, %p118
    %p120 = scmp.ne.s32.totalorder %s109, %s112
    %p121 = scmp.eq.s32.totalorder %s24, 15
    %p122 = por %p120, %p121
    %p123 = scmp.ne.s32.totalorder %s112, %s113
    %p124 = scmp.eq.s32.totalorder %s24, 0
    %p125 = por %p123, %p124
    %p126 = scmp.ne.s32.totalorder %s112, %s113
    %p127 = scmp.eq.s32.totalorder %s25, 15
    %p128 = por %p126, %p127
    %p130 = scmp.ne.s32.totalorder %s113, %s129
    %p131 = scmp.eq.s32.totalorder %s25, 0
    %p132 = por %p130, %p131
    %s133 = smul.u32 %s27, 2
    %s134 = smul.u32 %s34, 2
    %s135 = ssub.s32 %s26, %s38
    %s136 = ssub.s32 %s133, %s134
    %s137 = sor.u32 %s135, %s136
    %p138 = scmp.eq.s32.totalorder %s137, 0
    %s140 = sadd.s32 %s139, 1
    %s141 = scalar_select %p138, %s139, %s140
    %p144 = pneg %p138
    %p145 = scmp.eq.s32.totalorder %s19, 15
    %p146 = por %p144, %p145
    %p147 = scmp.ne.s32.totalorder %s139, %s142
    %p148 = scmp.eq.s32.totalorder %s19, 0
    %p149 = por %p147, %p148
    %p150 = scmp.ne.s32.totalorder %s139, %s142
    %p151 = scmp.eq.s32.totalorder %s24, 15
    %p152 = por %p150, %p151
    %p153 = scmp.ne.s32.totalorder %s142, %s143
    %p154 = scmp.eq.s32.totalorder %s24, 0
    %p155 = por %p153, %p154
    %p156 = scmp.ne.s32.totalorder %s142, %s143
    %p157 = scmp.eq.s32.totalorder %s25, 15
    %p158 = por %p156, %p157
    %p160 = scmp.ne.s32.totalorder %s143, %s159
    %p161 = scmp.eq.s32.totalorder %s25, 0
    %p162 = por %p160, %p161
    %s163 = smul.u32 %s27, 2
    %s164 = sadd.s32 %s163, 1
    %s165 = smul.u32 %s34, 2
    %s166 = sadd.s32 %s165, 1
    %s167 = ssub.s32 %s26, %s38
    %s168 = ssub.s32 %s164, %s166
    %s169 = sor.u32 %s167, %s168
    %p170 = scmp.eq.s32.totalorder %s169, 0
    %s172 = sadd.s32 %s171, 1
    %s173 = scalar_select %p170, %s171, %s172
    %p176 = pneg %p170
    %p177 = scmp.eq.s32.totalorder %s19, 15
    %p178 = por %p176, %p177
    %p179 = scmp.ne.s32.totalorder %s171, %s174
    %p180 = scmp.eq.s32.totalorder %s19, 0
    %p181 = por %p179, %p180
    %p182 = scmp.ne.s32.totalorder %s171, %s174
    %p183 = scmp.eq.s32.totalorder %s24, 15
    %p184 = por %p182, %p183
    %p185 = scmp.ne.s32.totalorder %s174, %s175
    %p186 = scmp.eq.s32.totalorder %s24, 0
    %p187 = por %p185, %p186
    %p188 = scmp.ne.s32.totalorder %s174, %s175
    %p189 = scmp.eq.s32.totalorder %s25, 15
    %p190 = por %p188, %p189
    %p192 = scmp.ne.s32.totalorder %s175, %s191
    %p193 = scmp.eq.s32.totalorder %s25, 0
    %p194 = por %p192, %p193
    %s195 = smul.u32 %s27, 2
    %s196 = sadd.s32 %s195, 2
    %s197 = smul.u32 %s34, 2
    %s198 = sadd.s32 %s197, 2
    %s199 = ssub.s32 %s26, %s38
    %s200 = ssub.s32 %s196, %s198
    %s201 = sor.u32 %s199, %s200
    %p202 = scmp.eq.s32.totalorder %s201, 0
    %s204 = sadd.s32 %s203, 1
    %s205 = scalar_select %p202, %s203, %s204
    %p208 = pneg %p202
    %p209 = scmp.eq.s32.totalorder %s19, 15
    %p210 = por %p208, %p209
    %p211 = scmp.ne.s32.totalorder %s203, %s206
    %p212 = scmp.eq.s32.totalorder %s19, 0
    %p213 = por %p211, %p212
    %p214 = scmp.ne.s32.totalorder %s203, %s206
    %p215 = scmp.eq.s32.totalorder %s24, 15
    %p216 = por %p214, %p215
    %p217 = scmp.ne.s32.totalorder %s206, %s207
    %p218 = scmp.eq.s32.totalorder %s24, 0
    %p219 = por %p217, %p218
    %p220 = scmp.ne.s32.totalorder %s206, %s207
    %p221 = scmp.eq.s32.totalorder %s25, 15
    %p222 = por %p220, %p221
    %p224 = scmp.ne.s32.totalorder %s207, %s223
    %p225 = scmp.eq.s32.totalorder %s25, 0
    %p226 = por %p224, %p225
    %s227 = smul.u32 %s27, 2
    %s228 = smul.u32 %s34, 2
    %s229 = ssub.s32 %s26, %s38
    %s230 = ssub.s32 %s227, %s228
    %s231 = sor.u32 %s229, %s230
    %p232 = scmp.eq.s32.totalorder %s231, 0
    %s234 = sadd.s32 %s233, 1
    %s235 = scalar_select %p232, %s233, %s234
    %p238 = pneg %p232
    %p239 = scmp.eq.s32.totalorder %s19, 15
    %p240 = por %p238, %p239
    %p241 = scmp.ne.s32.totalorder %s233, %s236
    %p242 = scmp.eq.s32.totalorder %s19, 0
    %p243 = por %p241, %p242
    %p244 = scmp.ne.s32.totalorder %s233, %s236
    %p245 = scmp.eq.s32.totalorder %s24, 15
    %p246 = por %p244, %p245
    %p247 = scmp.ne.s32.totalorder %s236, %s237
    %p248 = scmp.eq.s32.totalorder %s24, 0
    %p249 = por %p247, %p248
    %p250 = scmp.ne.s32.totalorder %s236, %s237
    %p251 = scmp.eq.s32.totalorder %s25, 15
    %p252 = por %p250, %p251
    %p254 = scmp.ne.s32.totalorder %s237, %s253
    %p255 = scmp.eq.s32.totalorder %s25, 0
    %p256 = por %p254, %p255
    %s257 = smul.u32 %s27, 2
    %s258 = sadd.s32 %s257, 1
    %s259 = smul.u32 %s34, 2
    %s260 = sadd.s32 %s259, 1
    %s261 = ssub.s32 %s26, %s38
    %s262 = ssub.s32 %s258, %s260
    %s263 = sor.u32 %s261, %s262
    %p264 = scmp.eq.s32.totalorder %s263, 0
    %s266 = sadd.s32 %s265, 1
    %s267 = scalar_select %p264, %s265, %s266
    %p270 = pneg %p264
    %p271 = scmp.eq.s32.totalorder %s19, 15
    %p272 = por %p270, %p271
    %p273 = scmp.ne.s32.totalorder %s265, %s268
    %p274 = scmp.eq.s32.totalorder %s19, 0
    %p275 = por %p273, %p274
    %p276 = scmp.ne.s32.totalorder %s265, %s268
    %p277 = scmp.eq.s32.totalorder %s24, 15
    %p278 = por %p276, %p277
    %p279 = scmp.ne.s32.totalorder %s268, %s269
    %p280 = scmp.eq.s32.totalorder %s24, 0
    %p281 = por %p279, %p280
    %p282 = scmp.ne.s32.totalorder %s268, %s269
    %p283 = scmp.eq.s32.totalorder %s25, 15
    %p284 = por %p282, %p283
    %p286 = scmp.ne.s32.totalorder %s269, %s285
    %p287 = scmp.eq.s32.totalorder %s25, 0
    %p288 = por %p286, %p287
    %s289 = smul.u32 %s27, 2
    %s290 = sadd.s32 %s289, 2
    %s291 = smul.u32 %s34, 2
    %s292 = sadd.s32 %s291, 2
    %s293 = ssub.s32 %s26, %s38
    %s294 = ssub.s32 %s290, %s292
    %s295 = sor.u32 %s293, %s294
    %p296 = scmp.eq.s32.totalorder %s295, 0
    %s298 = sadd.s32 %s297, 1
    %s299 = scalar_select %p296, %s297, %s298
    %p302 = pneg %p296
    %p303 = scmp.eq.s32.totalorder %s19, 15
    %p304 = por %p302, %p303
    %p305 = scmp.ne.s32.totalorder %s297, %s300
    %p306 = scmp.eq.s32.totalorder %s19, 0
    %p307 = por %p305, %p306
    %p308 = scmp.ne.s32.totalorder %s297, %s300
    %p309 = scmp.eq.s32.totalorder %s24, 15
    %p310 = por %p308, %p309
    %p311 = scmp.ne.s32.totalorder %s300, %s301
    %p312 = scmp.eq.s32.totalorder %s24, 0
    %p313 = por %p311, %p312
    %p314 = scmp.ne.s32.totalorder %s300, %s301
    %p315 = scmp.eq.s32.totalorder %s25, 15
    %p316 = por %p314, %p315
    %p318 = scmp.ne.s32.totalorder %s301, %s317
    %p319 = scmp.eq.s32.totalorder %s25, 0
    %p320 = por %p318, %p319
    %s321 = smul.u32 %s27, 2
    %s322 = smul.u32 %s34, 2
    %s323 = ssub.s32 %s26, %s38
    %s324 = ssub.s32 %s321, %s322
    %s325 = sor.u32 %s323, %s324
    %p326 = scmp.eq.s32.totalorder %s325, 0
    %s328 = sadd.s32 %s327, 1
    %s329 = scalar_select %p326, %s327, %s328
    %p332 = pneg %p326
    %p333 = scmp.eq.s32.totalorder %s19, 15
    %p334 = por %p332, %p333
    %p335 = scmp.ne.s32.totalorder %s327, %s330
    %p336 = scmp.eq.s32.totalorder %s19, 0
    %p337 = por %p335, %p336
    %p338 = scmp.ne.s32.totalorder %s327, %s330
    %p339 = scmp.eq.s32.totalorder %s24, 15
    %p340 = por %p338, %p339
    %p341 = scmp.ne.s32.totalorder %s330, %s331
    %p342 = scmp.eq.s32.totalorder %s24, 0
    %p343 = por %p341, %p342
    %p344 = scmp.ne.s32.totalorder %s330, %s331
    %p345 = scmp.eq.s32.totalorder %s25, 15
    %p346 = por %p344, %p345
    %p348 = scmp.ne.s32.totalorder %s331, %s347
    %p349 = scmp.eq.s32.totalorder %s25, 0
    %p350 = por %p348, %p349
    %s351 = smul.u32 %s27, 2
    %s352 = sadd.s32 %s351, 1
    %s353 = smul.u32 %s34, 2
    %s354 = sadd.s32 %s353, 1
    %s355 = ssub.s32 %s26, %s38
    %s356 = ssub.s32 %s352, %s354
    %s357 = sor.u32 %s355, %s356
    %p358 = scmp.eq.s32.totalorder %s357, 0
    %s360 = sadd.s32 %s359, 1
    %s361 = scalar_select %p358, %s359, %s360
    %p364 = pneg %p358
    %p365 = scmp.eq.s32.totalorder %s19, 15
    %p366 = por %p364, %p365
    %p367 = scmp.ne.s32.totalorder %s359, %s362
    %p368 = scmp.eq.s32.totalorder %s19, 0
    %p369 = por %p367, %p368
    %p370 = scmp.ne.s32.totalorder %s359, %s362
    %p371 = scmp.eq.s32.totalorder %s24, 15
    %p372 = por %p370, %p371
    %p373 = scmp.ne.s32.totalorder %s362, %s363
    %p374 = scmp.eq.s32.totalorder %s24, 0
    %p375 = por %p373, %p374
    %p376 = scmp.ne.s32.totalorder %s362, %s363
    %p377 = scmp.eq.s32.totalorder %s25, 15
    %p378 = por %p376, %p377
    %p380 = scmp.ne.s32.totalorder %s363, %s379
    %p381 = scmp.eq.s32.totalorder %s25, 0
    %p382 = por %p380, %p381
    %s383 = smul.u32 %s27, 2
    %s384 = sadd.s32 %s383, 2
    %s385 = smul.u32 %s34, 2
    %s386 = sadd.s32 %s385, 2
    %s387 = ssub.s32 %s26, %s38
    %s388 = ssub.s32 %s384, %s386
    %s389 = sor.u32 %s387, %s388
    %p390 = scmp.eq.s32.totalorder %s389, 0
    %s392 = sadd.s32 %s391, 1
    %s393 = scalar_select %p390, %s391, %s392
    %p396 = pneg %p390
    %p397 = scmp.eq.s32.totalorder %s19, 15
    %p398 = por %p396, %p397
    %p399 = scmp.ne.s32.totalorder %s391, %s394
    %p400 = scmp.eq.s32.totalorder %s19, 0
    %p401 = por %p399, %p400
    %p402 = scmp.ne.s32.totalorder %s391, %s394
    %p403 = scmp.eq.s32.totalorder %s24, 15
    %p404 = por %p402, %p403
    %p405 = scmp.ne.s32.totalorder %s394, %s395
    %p406 = scmp.eq.s32.totalorder %s24, 0
    %p407 = por %p405, %p406
    %p408 = scmp.ne.s32.totalorder %s394, %s395
    %p409 = scmp.eq.s32.totalorder %s25, 15
    %p410 = por %p408, %p409
    %p412 = scmp.ne.s32.totalorder %s395, %s411
    %p413 = scmp.eq.s32.totalorder %s25, 0
    %p414 = por %p412, %p413
    %s416 = sadd.s32 %s415, 1
    %p419 = scmp.eq.s32.totalorder %s19, 15
    %p420 = scmp.ne.s32.totalorder %s415, %s417
    %p421 = scmp.eq.s32.totalorder %s19, 0
    %p422 = por %p420, %p421
    %p423 = scmp.ne.s32.totalorder %s415, %s417
    %p424 = scmp.eq.s32.totalorder %s24, 15
    %p425 = por %p423, %p424
    %p426 = scmp.ne.s32.totalorder %s417, %s418
    %p427 = scmp.eq.s32.totalorder %s24, 0
    %p428 = por %p426, %p427
    %p429 = scmp.ne.s32.totalorder %s417, %s418
    %p430 = scmp.eq.s32.totalorder %s25, 15
    %p431 = por %p429, %p430
    %p433 = scmp.ne.s32.totalorder %s418, %s432
    %p434 = scmp.eq.s32.totalorder %s25, 0
    %p435 = por %p433, %p434
    %s436 = ssub.s32 %s26, %s38
    %s437 = ssub.s32 %s27, %s34
    %s438 = sor.u32 %s436, %s437
    %p439 = scmp.eq.s32.totalorder %s438, 0
    %s441 = sadd.s32 %s440, 1
    %s442 = scalar_select %p439, %s440, %s441
    %p445 = pneg %p439
    %p446 = scmp.eq.s32.totalorder %s19, 15
    %p447 = por %p445, %p446
    %p448 = scmp.ne.s32.totalorder %s440, %s443
    %p449 = scmp.eq.s32.totalorder %s19, 0
    %p450 = por %p448, %p449
    %p451 = scmp.ne.s32.totalorder %s440, %s443
    %p452 = scmp.eq.s32.totalorder %s24, 15
    %p453 = por %p451, %p452
    %p454 = scmp.ne.s32.totalorder %s443, %s444
    %p455 = scmp.eq.s32.totalorder %s24, 0
    %p456 = por %p454, %p455
    %p457 = scmp.ne.s32.totalorder %s443, %s444
    %p458 = scmp.eq.s32.totalorder %s25, 15
    %p459 = por %p457, %p458
    %p461 = scmp.ne.s32.totalorder %s444, %s460
    %p462 = scmp.eq.s32.totalorder %s25, 0
    %p463 = por %p461, %p462
    %p464 = scmp.le.s32.totalorder 1, %s19
    %p465 = scmp.lt.s32.totalorder %s19, 17
    %p466 = pnand %p464, %p465
    %p467 = pneg %p466
    // Predicated region
    $region9: #{downsampling_forward.1} parent=5 // pred_check
      _
    $region10: #{downsampling_forward.1} parent=5 // pred_check_branch
      %469 = sbr.rel (%p466) target = $region12
    $region11: #{downsampling_forward.1} parent=5 // pred_region
      %s470 = ssub.s32 %s19, 1
      // Predicated region
      $region13: #{downsampling_forward.1} parent=11 // pred_check
        %p471 = pneg %p428
      $region14: #{downsampling_forward.1} parent=11 // pred_check_branch
        %473 = sbr.rel (%p471) target = $region16
      $region15: #{downsampling_forward.1} parent=11 // pred_region
        _
      $region16: #{downsampling_forward.1} parent=11 // pred_fallthru
        _
    $region12: #{downsampling_forward.1} parent=5 // pred_fallthru
      _
    %p474 = scmp.lt.s32.totalorder %s19, 16
    // Predicated region
    $region17: #{downsampling_forward.1} parent=5 // pred_check
      %p475 = pneg %p474
    $region18: #{downsampling_forward.1} parent=5 // pred_check_branch
      %477 = sbr.rel (%p475) target = $region20
    $region19: #{downsampling_forward.1} parent=5 // pred_region
      // Predicated region
      $region21: #{downsampling_forward.1} parent=19 // pred_check
        %p478 = pneg %p55
      $region22: #{downsampling_forward.1} parent=19 // pred_check_branch
        %480 = sbr.rel (%p478) target = $region24
      $region23: #{downsampling_forward.1} parent=19 // pred_region
        %s481 = smul.u32 %s27, 2
        %p482 = scmp.lt.s32.totalorder %s26, 1
        %s483 = scalar_select %p482, %s26, 1
        %p484 = scmp.lt.s32.totalorder %s481, 16
        %s485 = scalar_select %p484, %s481, 16
        %s486 = smul.addr %s483, 17
        %s487 = sadd.s32 %s485, %s486
        %s488 = smul.addr %s487, 2
        %s489 = scalar_lea.vmem %s0, %s488
        %s490 = smul.u32 %s27, 2
      $region24: #{downsampling_forward.1} parent=19 // pred_fallthru
        _
      // Predicated region
      $region25: #{downsampling_forward.1} parent=19 // pred_check
        %p491 = pneg %p87
      $region26: #{downsampling_forward.1} parent=19 // pred_check_branch
        %493 = sbr.rel (%p491) target = $region28
      $region27: #{downsampling_forward.1} parent=19 // pred_region
        %s494 = smul.u32 %s27, 2
        %s495 = sadd.s32 %s494, 1
        %p496 = scmp.lt.s32.totalorder %s26, 1
        %s497 = scalar_select %p496, %s26, 1
        %p498 = scmp.lt.s32.totalorder %s495, 16
        %s499 = scalar_select %p498, %s495, 16
        %s500 = smul.addr %s497, 17
        %s501 = sadd.s32 %s499, %s500
        %s502 = smul.addr %s501, 2
        %s503 = scalar_lea.vmem %s1, %s502
        %s504 = smul.u32 %s27, 2
        %s505 = sadd.s32 %s504, 1
      $region28: #{downsampling_forward.1} parent=19 // pred_fallthru
        _
      // Predicated region
      $region29: #{downsampling_forward.1} parent=19 // pred_check
        %p506 = pneg %p119
      $region30: #{downsampling_forward.1} parent=19 // pred_check_branch
        %508 = sbr.rel (%p506) target = $region32
      $region31: #{downsampling_forward.1} parent=19 // pred_region
        %s509 = smul.u32 %s27, 2
        %s510 = sadd.s32 %s509, 2
        %p511 = scmp.lt.s32.totalorder %s26, 1
        %s512 = scalar_select %p511, %s26, 1
        %p513 = scmp.lt.s32.totalorder %s510, 16
        %s514 = scalar_select %p513, %s510, 16
        %s515 = smul.addr %s512, 17
        %s516 = sadd.s32 %s514, %s515
        %s517 = smul.addr %s516, 2
        %s518 = scalar_lea.vmem %s2, %s517
        %s519 = smul.u32 %s27, 2
        %s520 = sadd.s32 %s519, 2
      $region32: #{downsampling_forward.1} parent=19 // pred_fallthru
        _
      // Predicated region
      $region33: #{downsampling_forward.1} parent=19 // pred_check
        %p521 = pneg %p149
      $region34: #{downsampling_forward.1} parent=19 // pred_check_branch
        %523 = sbr.rel (%p521) target = $region36
      $region35: #{downsampling_forward.1} parent=19 // pred_region
        %s524 = smul.u32 %s27, 2
        %p525 = scmp.lt.s32.totalorder %s26, 1
        %s526 = scalar_select %p525, %s26, 1
        %p527 = scmp.lt.s32.totalorder %s524, 16
        %s528 = scalar_select %p527, %s524, 16
        %s529 = smul.addr %s526, 17
        %s530 = sadd.s32 %s528, %s529
        %s531 = sadd.s32 %s530, 34
        %s532 = smul.addr %s531, 2
        %s533 = scalar_lea.vmem %s3, %s532
        %s534 = smul.u32 %s27, 2
      $region36: #{downsampling_forward.1} parent=19 // pred_fallthru
        _
      // Predicated region
      $region37: #{downsampling_forward.1} parent=19 // pred_check
        %p535 = pneg %p181
      $region38: #{downsampling_forward.1} parent=19 // pred_check_branch
        %537 = sbr.rel (%p535) target = $region40
      $region39: #{downsampling_forward.1} parent=19 // pred_region
        %s538 = smul.u32 %s27, 2
        %s539 = sadd.s32 %s538, 1
        %p540 = scmp.lt.s32.totalorder %s26, 1
        %s541 = scalar_select %p540, %s26, 1
        %p542 = scmp.lt.s32.totalorder %s539, 16
        %s543 = scalar_select %p542, %s539, 16
        %s544 = smul.addr %s541, 17
        %s545 = sadd.s32 %s543, %s544
        %s546 = sadd.s32 %s545, 34
        %s547 = smul.addr %s546, 2
        %s548 = scalar_lea.vmem %s4, %s547
        %s549 = smul.u32 %s27, 2
        %s550 = sadd.s32 %s549, 1
      $region40: #{downsampling_forward.1} parent=19 // pred_fallthru
        _
      // Predicated region
      $region41: #{downsampling_forward.1} parent=19 // pred_check
        %p551 = pneg %p213
      $region42: #{downsampling_forward.1} parent=19 // pred_check_branch
        %553 = sbr.rel (%p551) target = $region44
      $region43: #{downsampling_forward.1} parent=19 // pred_region
        %s554 = smul.u32 %s27, 2
        %s555 = sadd.s32 %s554, 2
        %p556 = scmp.lt.s32.totalorder %s26, 1
        %s557 = scalar_select %p556, %s26, 1
        %p558 = scmp.lt.s32.totalorder %s555, 16
        %s559 = scalar_select %p558, %s555, 16
        %s560 = smul.addr %s557, 17
        %s561 = sadd.s32 %s559, %s560
        %s562 = sadd.s32 %s561, 34
        %s563 = smul.addr %s562, 2
        %s564 = scalar_lea.vmem %s5, %s563
        %s565 = smul.u32 %s27, 2
        %s566 = sadd.s32 %s565, 2
      $region44: #{downsampling_forward.1} parent=19 // pred_fallthru
        _
      // Predicated region
      $region45: #{downsampling_forward.1} parent=19 // pred_check
        %p567 = pneg %p243
      $region46: #{downsampling_forward.1} parent=19 // pred_check_branch
        %569 = sbr.rel (%p567) target = $region48
      $region47: #{downsampling_forward.1} parent=19 // pred_region
        %s570 = smul.u32 %s27, 2
        %p571 = scmp.lt.s32.totalorder %s26, 1
        %s572 = scalar_select %p571, %s26, 1
        %p573 = scmp.lt.s32.totalorder %s570, 16
        %s574 = scalar_select %p573, %s570, 16
        %s575 = smul.addr %s572, 17
        %s576 = sadd.s32 %s574, %s575
        %s577 = sadd.s32 %s576, 68
        %s578 = smul.addr %s577, 2
        %s579 = scalar_lea.vmem %s6, %s578
        %s580 = smul.u32 %s27, 2
      $region48: #{downsampling_forward.1} parent=19 // pred_fallthru
        _
      // Predicated region
      $region49: #{downsampling_forward.1} parent=19 // pred_check
        %p581 = pneg %p275
      $region50: #{downsampling_forward.1} parent=19 // pred_check_branch
        %583 = sbr.rel (%p581) target = $region52
      $region51: #{downsampling_forward.1} parent=19 // pred_region
        %s584 = smul.u32 %s27, 2
        %s585 = sadd.s32 %s584, 1
        %p586 = scmp.lt.s32.totalorder %s26, 1
        %s587 = scalar_select %p586, %s26, 1
        %p588 = scmp.lt.s32.totalorder %s585, 16
        %s589 = scalar_select %p588, %s585, 16
        %s590 = smul.addr %s587, 17
        %s591 = sadd.s32 %s589, %s590
        %s592 = sadd.s32 %s591, 68
        %s593 = smul.addr %s592, 2
        %s594 = scalar_lea.vmem %s7, %s593
        %s595 = smul.u32 %s27, 2
        %s596 = sadd.s32 %s595, 1
      $region52: #{downsampling_forward.1} parent=19 // pred_fallthru
        _
      // Predicated region
      $region53: #{downsampling_forward.1} parent=19 // pred_check
        %p597 = pneg %p307
      $region54: #{downsampling_forward.1} parent=19 // pred_check_branch
        %599 = sbr.rel (%p597) target = $region56
      $region55: #{downsampling_forward.1} parent=19 // pred_region
        %s600 = smul.u32 %s27, 2
        %s601 = sadd.s32 %s600, 2
        %p602 = scmp.lt.s32.totalorder %s26, 1
        %s603 = scalar_select %p602, %s26, 1
        %p604 = scmp.lt.s32.totalorder %s601, 16
        %s605 = scalar_select %p604, %s601, 16
        %s606 = smul.addr %s603, 17
        %s607 = sadd.s32 %s605, %s606
        %s608 = sadd.s32 %s607, 68
        %s609 = smul.addr %s608, 2
        %s610 = scalar_lea.vmem %s8, %s609
        %s611 = smul.u32 %s27, 2
        %s612 = sadd.s32 %s611, 2
      $region56: #{downsampling_forward.1} parent=19 // pred_fallthru
        _
      // Predicated region
      $region57: #{downsampling_forward.1} parent=19 // pred_check
        %p613 = pneg %p337
      $region58: #{downsampling_forward.1} parent=19 // pred_check_branch
        %615 = sbr.rel (%p613) target = $region60
      $region59: #{downsampling_forward.1} parent=19 // pred_region
        %s616 = smul.u32 %s27, 2
        %p617 = scmp.lt.s32.totalorder %s26, 1
        %s618 = scalar_select %p617, %s26, 1
        %p619 = scmp.lt.s32.totalorder %s616, 16
        %s620 = scalar_select %p619, %s616, 16
        %s621 = smul.addr %s618, 17
        %s622 = sadd.s32 %s620, %s621
        %s623 = sadd.s32 %s622, 102
        %s624 = smul.addr %s623, 2
        %s625 = scalar_lea.vmem %s9, %s624
        %s626 = smul.u32 %s27, 2
      $region60: #{downsampling_forward.1} parent=19 // pred_fallthru
        _
      // Predicated region
      $region61: #{downsampling_forward.1} parent=19 // pred_check
        %p627 = pneg %p369
      $region62: #{downsampling_forward.1} parent=19 // pred_check_branch
        %629 = sbr.rel (%p627) target = $region64
      $region63: #{downsampling_forward.1} parent=19 // pred_region
        %s630 = smul.u32 %s27, 2
        %s631 = sadd.s32 %s630, 1
        %p632 = scmp.lt.s32.totalorder %s26, 1
        %s633 = scalar_select %p632, %s26, 1
        %p634 = scmp.lt.s32.totalorder %s631, 16
        %s635 = scalar_select %p634, %s631, 16
        %s636 = smul.addr %s633, 17
        %s637 = sadd.s32 %s635, %s636
        %s638 = sadd.s32 %s637, 102
        %s639 = smul.addr %s638, 2
        %s640 = scalar_lea.vmem %s10, %s639
        %s641 = smul.u32 %s27, 2
        %s642 = sadd.s32 %s641, 1
      $region64: #{downsampling_forward.1} parent=19 // pred_fallthru
        _
      // Predicated region
      $region65: #{downsampling_forward.1} parent=19 // pred_check
        %p643 = pneg %p401
      $region66: #{downsampling_forward.1} parent=19 // pred_check_branch
        %645 = sbr.rel (%p643) target = $region68
      $region67: #{downsampling_forward.1} parent=19 // pred_region
        %s646 = smul.u32 %s27, 2
        %s647 = sadd.s32 %s646, 2
        %p648 = scmp.lt.s32.totalorder %s26, 1
        %s649 = scalar_select %p648, %s26, 1
        %p650 = scmp.lt.s32.totalorder %s647, 16
        %s651 = scalar_select %p650, %s647, 16
        %s652 = smul.addr %s649, 17
        %s653 = sadd.s32 %s651, %s652
        %s654 = sadd.s32 %s653, 102
        %s655 = smul.addr %s654, 2
        %s656 = scalar_lea.vmem %s11, %s655
        %s657 = smul.u32 %s27, 2
        %s658 = sadd.s32 %s657, 2
      $region68: #{downsampling_forward.1} parent=19 // pred_fallthru
        _
    $region20: #{downsampling_forward.1} parent=5 // pred_fallthru
      _
    %p659 = scmp.le.s32.totalorder 1, %s19
    %p660 = scmp.lt.s32.totalorder %s19, 17
    %p661 = pnand %p659, %p660
    %p662 = pneg %p661
    // Predicated region
    $region69: #{downsampling_forward.1} parent=5 // pred_check
      _
    $region70: #{downsampling_forward.1} parent=5 // pred_check_branch
      %664 = sbr.rel (%p661) target = $region72
    $region71: #{downsampling_forward.1} parent=5 // pred_region
      %s665 = ssub.s32 %s19, 1
      %s666 = smul.u32 %s29, 2
      %p667 = scmp.lt.s32.totalorder %s28, 1
      %s668 = scalar_select %p667, %s28, 1
      %p669 = scmp.lt.s32.totalorder %s666, 16
      %s670 = scalar_select %p669, %s666, 16
      %s671 = smul.addr %s668, 17
      %s672 = sadd.s32 %s670, %s671
      %s673 = smul.addr %s672, 2
      %s674 = scalar_lea.vmem %s0, %s673
      %p675 = pneg %p61
      %p676 = pneg %p58
      %s677 = smul.u32 %s29, 2
      %s678 = sadd.s32 %s677, 1
      %p679 = scmp.lt.s32.totalorder %s28, 1
      %s680 = scalar_select %p679, %s28, 1
      %p681 = scmp.lt.s32.totalorder %s678, 16
      %s682 = scalar_select %p681, %s678, 16
      %s683 = smul.addr %s680, 17
      %s684 = sadd.s32 %s682, %s683
      %s685 = smul.addr %s684, 2
      %s686 = scalar_lea.vmem %s1, %s685
      %p687 = pneg %p93
      %p688 = pneg %p90
      %s689 = smul.u32 %s29, 2
      %s690 = sadd.s32 %s689, 2
      %p691 = scmp.lt.s32.totalorder %s28, 1
      %s692 = scalar_select %p691, %s28, 1
      %p693 = scmp.lt.s32.totalorder %s690, 16
      %s694 = scalar_select %p693, %s690, 16
      %s695 = smul.addr %s692, 17
      %s696 = sadd.s32 %s694, %s695
      %s697 = smul.addr %s696, 2
      %s698 = scalar_lea.vmem %s2, %s697
      %p699 = pneg %p125
      %p700 = pneg %p122
      %s701 = smul.u32 %s29, 2
      %p702 = scmp.lt.s32.totalorder %s28, 1
      %s703 = scalar_select %p702, %s28, 1
      %p704 = scmp.lt.s32.totalorder %s701, 16
      %s705 = scalar_select %p704, %s701, 16
      %s706 = smul.addr %s703, 17
      %s707 = sadd.s32 %s705, %s706
      %s708 = sadd.s32 %s707, 34
      %s709 = smul.addr %s708, 2
      %s710 = scalar_lea.vmem %s3, %s709
      %p711 = pneg %p155
      %p712 = pneg %p152
      %s713 = smul.u32 %s29, 2
      %s714 = sadd.s32 %s713, 1
      %p715 = scmp.lt.s32.totalorder %s28, 1
      %s716 = scalar_select %p715, %s28, 1
      %p717 = scmp.lt.s32.totalorder %s714, 16
      %s718 = scalar_select %p717, %s714, 16
      %s719 = smul.addr %s716, 17
      %s720 = sadd.s32 %s718, %s719
      %s721 = sadd.s32 %s720, 34
      %s722 = smul.addr %s721, 2
      %s723 = scalar_lea.vmem %s4, %s722
      %p724 = pneg %p187
      %p725 = pneg %p184
      %s726 = smul.u32 %s29, 2
      %s727 = sadd.s32 %s726, 2
      %p728 = scmp.lt.s32.totalorder %s28, 1
      %s729 = scalar_select %p728, %s28, 1
      %p730 = scmp.lt.s32.totalorder %s727, 16
      %s731 = scalar_select %p730, %s727, 16
      %s732 = smul.addr %s729, 17
      %s733 = sadd.s32 %s731, %s732
      %s734 = sadd.s32 %s733, 34
      %s735 = smul.addr %s734, 2
      %s736 = scalar_lea.vmem %s5, %s735
      %p737 = pneg %p219
      %p738 = pneg %p216
      %s739 = smul.u32 %s29, 2
      %p740 = scmp.lt.s32.totalorder %s28, 1
      %s741 = scalar_select %p740, %s28, 1
      %p742 = scmp.lt.s32.totalorder %s739, 16
      %s743 = scalar_select %p742, %s739, 16
      %s744 = smul.addr %s741, 17
      %s745 = sadd.s32 %s743, %s744
      %s746 = sadd.s32 %s745, 68
      %s747 = smul.addr %s746, 2
      %s748 = scalar_lea.vmem %s6, %s747
      %p749 = pneg %p249
      %p750 = pneg %p246
      %s751 = smul.u32 %s29, 2
      %s752 = sadd.s32 %s751, 1
      %p753 = scmp.lt.s32.totalorder %s28, 1
      %s754 = scalar_select %p753, %s28, 1
      %p755 = scmp.lt.s32.totalorder %s752, 16
      %s756 = scalar_select %p755, %s752, 16
      %s757 = smul.addr %s754, 17
      %s758 = sadd.s32 %s756, %s757
      %s759 = sadd.s32 %s758, 68
      %s760 = smul.addr %s759, 2
      %s761 = scalar_lea.vmem %s7, %s760
      %p762 = pneg %p281
      %p763 = pneg %p278
      %s764 = smul.u32 %s29, 2
      %s765 = sadd.s32 %s764, 2
      %p766 = scmp.lt.s32.totalorder %s28, 1
      %s767 = scalar_select %p766, %s28, 1
      %p768 = scmp.lt.s32.totalorder %s765, 16
      %s769 = scalar_select %p768, %s765, 16
      %s770 = smul.addr %s767, 17
      %s771 = sadd.s32 %s769, %s770
      %s772 = sadd.s32 %s771, 68
      %s773 = smul.addr %s772, 2
      %s774 = scalar_lea.vmem %s8, %s773
      %p775 = pneg %p313
      %p776 = pneg %p310
      %s777 = smul.u32 %s29, 2
      %p778 = scmp.lt.s32.totalorder %s28, 1
      %s779 = scalar_select %p778, %s28, 1
      %p780 = scmp.lt.s32.totalorder %s777, 16
      %s781 = scalar_select %p780, %s777, 16
      %s782 = smul.addr %s779, 17
      %s783 = sadd.s32 %s781, %s782
      %s784 = sadd.s32 %s783, 102
      %s785 = smul.addr %s784, 2
      %s786 = scalar_lea.vmem %s9, %s785
      %p787 = pneg %p343
      %p788 = pneg %p340
      %s789 = smul.u32 %s29, 2
      %s790 = sadd.s32 %s789, 1
      %p791 = scmp.lt.s32.totalorder %s28, 1
      %s792 = scalar_select %p791, %s28, 1
      %p793 = scmp.lt.s32.totalorder %s790, 16
      %s794 = scalar_select %p793, %s790, 16
      %s795 = smul.addr %s792, 17
      %s796 = sadd.s32 %s794, %s795
      %s797 = sadd.s32 %s796, 102
      %s798 = smul.addr %s797, 2
      %s799 = scalar_lea.vmem %s10, %s798
      %p800 = pneg %p375
      %p801 = pneg %p372
      %s802 = smul.u32 %s29, 2
      %s803 = sadd.s32 %s802, 2
      %p804 = scmp.lt.s32.totalorder %s28, 1
      %s805 = scalar_select %p804, %s28, 1
      %p806 = scmp.lt.s32.totalorder %s803, 16
      %s807 = scalar_select %p806, %s803, 16
      %s808 = smul.addr %s805, 17
      %s809 = sadd.s32 %s807, %s808
      %s810 = sadd.s32 %s809, 102
      %s811 = smul.addr %s810, 2
      %s812 = scalar_lea.vmem %s11, %s811
      %p813 = pneg %p407
      %p814 = pneg %p404
      %p815 = pneg %p428
      %p816 = pneg %p425
      %p817 = pneg %p456
      %p818 = pneg %p453
      %p819 = scmp.lt.s32.totalorder %s28, 1
      %s820 = scalar_select %p819, %s28, 1
      %p821 = scmp.lt.s32.totalorder %s29, 7
      %s822 = scalar_select %p821, %s29, 7
      %s823 = smul.addr %s820, 8
      %s824 = sadd.s32 %s822, %s823
      %s825 = smul.addr %s824, 8
      %s826 = scalar_lea.vmem %s13, %s825
      %s827 = smul.u32 %s29, 2
      %p828 = scmp.lt.s32.totalorder %s28, 1
      %s829 = scalar_select %p828, %s28, 1
      %p830 = scmp.lt.s32.totalorder %s827, 16
      %s831 = scalar_select %p830, %s827, 16
      %s832 = smul.addr %s829, 17
      %s833 = sadd.s32 %s831, %s832
      %s834 = smul.addr %s833, 2
      %s835 = scalar_lea.vmem %s0, %s834
      %s836 = smul.u32 %s29, 2
      %s837 = smul.u32 %s29, 2
      %s838 = sadd.s32 %s837, 1
      %p839 = scmp.lt.s32.totalorder %s28, 1
      %s840 = scalar_select %p839, %s28, 1
      %p841 = scmp.lt.s32.totalorder %s838, 16
      %s842 = scalar_select %p841, %s838, 16
      %s843 = smul.addr %s840, 17
      %s844 = sadd.s32 %s842, %s843
      %s845 = smul.addr %s844, 2
      %s846 = scalar_lea.vmem %s1, %s845
      %s847 = smul.u32 %s29, 2
      %s848 = sadd.s32 %s847, 1
      %s849 = smul.u32 %s29, 2
      %s850 = sadd.s32 %s849, 2
      %p851 = scmp.lt.s32.totalorder %s28, 1
      %s852 = scalar_select %p851, %s28, 1
      %p853 = scmp.lt.s32.totalorder %s850, 16
      %s854 = scalar_select %p853, %s850, 16
      %s855 = smul.addr %s852, 17
      %s856 = sadd.s32 %s854, %s855
      %s857 = smul.addr %s856, 2
      %s858 = scalar_lea.vmem %s2, %s857
      %s859 = smul.u32 %s29, 2
      %s860 = sadd.s32 %s859, 2
      %s861 = smul.u32 %s29, 2
      %p862 = scmp.lt.s32.totalorder %s28, 1
      %s863 = scalar_select %p862, %s28, 1
      %p864 = scmp.lt.s32.totalorder %s861, 16
      %s865 = scalar_select %p864, %s861, 16
      %s866 = smul.addr %s863, 17
      %s867 = sadd.s32 %s865, %s866
      %s868 = sadd.s32 %s867, 34
      %s869 = smul.addr %s868, 2
      %s870 = scalar_lea.vmem %s3, %s869
      %s871 = smul.u32 %s29, 2
      %s872 = smul.u32 %s29, 2
      %s873 = sadd.s32 %s872, 1
      %p874 = scmp.lt.s32.totalorder %s28, 1
      %s875 = scalar_select %p874, %s28, 1
      %p876 = scmp.lt.s32.totalorder %s873, 16
      %s877 = scalar_select %p876, %s873, 16
      %s878 = smul.addr %s875, 17
      %s879 = sadd.s32 %s877, %s878
      %s880 = sadd.s32 %s879, 34
      %s881 = smul.addr %s880, 2
      %s882 = scalar_lea.vmem %s4, %s881
      %s883 = smul.u32 %s29, 2
      %s884 = sadd.s32 %s883, 1
      %s885 = smul.u32 %s29, 2
      %s886 = sadd.s32 %s885, 2
      %p887 = scmp.lt.s32.totalorder %s28, 1
      %s888 = scalar_select %p887, %s28, 1
      %p889 = scmp.lt.s32.totalorder %s886, 16
      %s890 = scalar_select %p889, %s886, 16
      %s891 = smul.addr %s888, 17
      %s892 = sadd.s32 %s890, %s891
      %s893 = sadd.s32 %s892, 34
      %s894 = smul.addr %s893, 2
      %s895 = scalar_lea.vmem %s5, %s894
      %s896 = smul.u32 %s29, 2
      %s897 = sadd.s32 %s896, 2
      %s898 = smul.u32 %s29, 2
      %p899 = scmp.lt.s32.totalorder %s28, 1
      %s900 = scalar_select %p899, %s28, 1
      %p901 = scmp.lt.s32.totalorder %s898, 16
      %s902 = scalar_select %p901, %s898, 16
      %s903 = smul.addr %s900, 17
      %s904 = sadd.s32 %s902, %s903
      %s905 = sadd.s32 %s904, 68
      %s906 = smul.addr %s905, 2
      %s907 = scalar_lea.vmem %s6, %s906
      %s908 = smul.u32 %s29, 2
      %s909 = smul.u32 %s29, 2
      %s910 = sadd.s32 %s909, 1
      %p911 = scmp.lt.s32.totalorder %s28, 1
      %s912 = scalar_select %p911, %s28, 1
      %p913 = scmp.lt.s32.totalorder %s910, 16
      %s914 = scalar_select %p913, %s910, 16
      %s915 = smul.addr %s912, 17
      %s916 = sadd.s32 %s914, %s915
      %s917 = sadd.s32 %s916, 68
      %s918 = smul.addr %s917, 2
      %s919 = scalar_lea.vmem %s7, %s918
      %s920 = smul.u32 %s29, 2
      %s921 = sadd.s32 %s920, 1
      %s922 = smul.u32 %s29, 2
      %s923 = sadd.s32 %s922, 2
      %p924 = scmp.lt.s32.totalorder %s28, 1
      %s925 = scalar_select %p924, %s28, 1
      %p926 = scmp.lt.s32.totalorder %s923, 16
      %s927 = scalar_select %p926, %s923, 16
      %s928 = smul.addr %s925, 17
      %s929 = sadd.s32 %s927, %s928
      %s930 = sadd.s32 %s929, 68
      %s931 = smul.addr %s930, 2
      %s932 = scalar_lea.vmem %s8, %s931
      %s933 = smul.u32 %s29, 2
      %s934 = sadd.s32 %s933, 2
      %s935 = smul.u32 %s29, 2
      %p936 = scmp.lt.s32.totalorder %s28, 1
      %s937 = scalar_select %p936, %s28, 1
      %p938 = scmp.lt.s32.totalorder %s935, 16
      %s939 = scalar_select %p938, %s935, 16
      %s940 = smul.addr %s937, 17
      %s941 = sadd.s32 %s939, %s940
      %s942 = sadd.s32 %s941, 102
      %s943 = smul.addr %s942, 2
      %s944 = scalar_lea.vmem %s9, %s943
      %s945 = smul.u32 %s29, 2
      %s946 = smul.u32 %s29, 2
      %s947 = sadd.s32 %s946, 1
      %p948 = scmp.lt.s32.totalorder %s28, 1
      %s949 = scalar_select %p948, %s28, 1
      %p950 = scmp.lt.s32.totalorder %s947, 16
      %s951 = scalar_select %p950, %s947, 16
      %s952 = smul.addr %s949, 17
      %s953 = sadd.s32 %s951, %s952
      %s954 = sadd.s32 %s953, 102
      %s955 = smul.addr %s954, 2
      %s956 = scalar_lea.vmem %s10, %s955
      %s957 = smul.u32 %s29, 2
      %s958 = sadd.s32 %s957, 1
      %s959 = smul.u32 %s29, 2
      %s960 = sadd.s32 %s959, 2
      %p961 = scmp.lt.s32.totalorder %s28, 1
      %s962 = scalar_select %p961, %s28, 1
      %p963 = scmp.lt.s32.totalorder %s960, 16
      %s964 = scalar_select %p963, %s960, 16
      %s965 = smul.addr %s962, 17
      %s966 = sadd.s32 %s964, %s965
      %s967 = sadd.s32 %s966, 102
      %s968 = smul.addr %s967, 2
      %s969 = scalar_lea.vmem %s11, %s968
      %s970 = smul.u32 %s29, 2
      %s971 = sadd.s32 %s970, 2
      %p972 = scmp.lt.s32.totalorder %s28, 1
      %s973 = scalar_select %p972, %s28, 1
      %p974 = scmp.lt.s32.totalorder %s29, 7
      %s975 = scalar_select %p974, %s29, 7
      %s976 = smul.addr %s973, 8
      %s977 = sadd.s32 %s975, %s976
      %s978 = smul.addr %s977, 8
      %s979 = scalar_lea.vmem %s13, %s978
      %v981 = vld [vmem:[%s835] sm:$0x3]
      %vm982 = vcmask 582656
      %983 = vst.msk [vmem:[#allocation2] sm:$0x3] %vm982, %v981
      %v984 = vld [vmem:[%s870] sm:$0x3]
      %s986 = scalar_lea.vmem [#allocation1], 1
      %987 = vst [vmem:[%s986] ss:$2 sm:$0xff] %v984
      %v988 = vld.sshfl [vmem:[#allocation1] sm:$0xff pattern:$0x75643120]
      %vm990 = vcmask 584706
      %991 = vst.msk [vmem:[#allocation2] sm:$0xc] %vm990, %v988
      %v992 = vld [vmem:[%s835] sm:$0x3]
      %994 = vst [vmem:[#allocation1] ss:$2 sm:$0xff] %v992
      %v995 = vld.sshfl [vmem:[#allocation1] sm:$0xff pattern:$0x75643120]
      %997 = vrot.lane.b32.xlu0 %v995, 127
      %v998 = vpop.permute.xlu0 %997
      %1000 = vst.msk [vmem:[#allocation2 + $0x4] sm:$0x3] %vm982, %v998
      %v1001 = vld [vmem:[%s907] sm:$0x3]
      %s1003 = scalar_lea.vmem [#allocation1], 1
      %1004 = vst [vmem:[%s1003] ss:$2 sm:$0xff] %v1001
      %v1005 = vld.sshfl [vmem:[#allocation1] sm:$0xff pattern:$0x75643120]
      %1007 = vst.msk [vmem:[#allocation2 + $0x4] sm:$0xc] %vm990, %v1005
      %v1008 = vld [vmem:[%s944] sm:$0x3]
      %1009 = vst.msk [vmem:[#allocation2 + $0x8] sm:$0x3] %vm982, %v1008
      %v1010 = vld [vmem:[%s907] sm:$0x3]
      %s1012 = scalar_lea.vmem [#allocation1], 1
      %1013 = vst [vmem:[%s1012] ss:$2 sm:$0xff] %v1010
      %v1014 = vld.sshfl [vmem:[#allocation1] sm:$0xff pattern:$0x75643120]
      %1016 = vrot.lane.b32.xlu0 %v1014, 127
      %v1017 = vpop.permute.xlu0 %1016
      %1019 = vst.msk [vmem:[#allocation2 + $0x8] sm:$0xc] %vm990, %v1017
      %v1020 = vld [vmem:[%s835] sm:$0x3]
      %1022 = vst [vmem:[#allocation1] ss:$2 sm:$0xff] %v1020
      %v1023 = vld.sshfl [vmem:[#allocation1] sm:$0xff pattern:$0x75643120]
      %1025 = vrot.lane.b32.xlu0 %v1023, 119
      %v1026 = vpop.permute.xlu0 %1025
      %1028 = vst.msk [vmem:[#allocation2 + $0xc] sm:$0x3] %vm982, %v1026
      %v1029 = vld [vmem:[%s870] sm:$0x3]
      %s1031 = scalar_lea.vmem [#allocation1], 1
      %1032 = vst [vmem:[%s1031] ss:$2 sm:$0xff] %v1029
      %v1033 = vld.sshfl [vmem:[#allocation1] sm:$0xff pattern:$0x75643120]
      %1035 = vrot.lane.b32.xlu0 %v1033, 119
      %v1036 = vpop.permute.xlu0 %1035
      %1038 = vst.msk [vmem:[#allocation2 + $0xc] sm:$0xc] %vm990, %v1036
      %v1039 = vld [vmem:[%s835] sm:$0x3]
      %1041 = vst [vmem:[#allocation1] ss:$2 sm:$0xff] %v1039
      %v1042 = vld.sshfl [vmem:[#allocation1] sm:$0xff pattern:$0x75643120]
      %1044 = vrot.lane.b32.xlu0 %v1042, 118
      %v1045 = vpop.permute.xlu0 %1044
      %1047 = vst.msk [vmem:[#allocation2 + $0x10] sm:$0x3] %vm982, %v1045
      %v1048 = vld [vmem:[%s846] sm:$0x3]
      %s1050 = scalar_lea.vmem [#allocation1], 1
      %1051 = vst [vmem:[%s1050] ss:$2 sm:$0xff] %v1048
      %v1052 = vld.sshfl [vmem:[#allocation1] sm:$0xff pattern:$0x75643120]
      %1054 = vst.msk [vmem:[#allocation2 + $0x10] sm:$0xc] %vm990, %v1052
      %v1055 = vld [vmem:[%s882] sm:$0x3]
      %1056 = vst.msk [vmem:[#allocation2 + $0x14] sm:$0x3] %vm982, %v1055
      %v1057 = vld [vmem:[%s846] sm:$0x3]
      %s1059 = scalar_lea.vmem [#allocation1], 1
      %1060 = vst [vmem:[%s1059] ss:$2 sm:$0xff] %v1057
      %v1061 = vld.sshfl [vmem:[#allocation1] sm:$0xff pattern:$0x75643120]
      %1063 = vrot.lane.b32.xlu0 %v1061, 127
      %v1064 = vpop.permute.xlu0 %1063
      %1066 = vst.msk [vmem:[#allocation2 + $0x14] sm:$0xc] %vm990, %v1064
      %v1067 = vld [vmem:[%s919] sm:$0x3]
      %1068 = vst.msk [vmem:[#allocation2 + $0x18] sm:$0x3] %vm982, %v1067
      %v1069 = vld [vmem:[%s956] sm:$0x3]
      %s1071 = scalar_lea.vmem [#allocation1], 1
      %1072 = vst [vmem:[%s1071] ss:$2 sm:$0xff] %v1069
      %v1073 = vld.sshfl [vmem:[#allocation1] sm:$0xff pattern:$0x75643120]
      %1075 = vst.msk [vmem:[#allocation2 + $0x18] sm:$0xc] %vm990, %v1073
      %v1076 = vld [vmem:[%s919] sm:$0x3]
      %1078 = vst [vmem:[#allocation1] ss:$2 sm:$0xff] %v1076
      %v1079 = vld.sshfl [vmem:[#allocation1] sm:$0xff pattern:$0x75643120]
      %1081 = vrot.lane.b32.xlu0 %v1079, 127
      %v1082 = vpop.permute.xlu0 %1081
      %1084 = vst.msk [vmem:[#allocation2 + $0x1c] sm:$0x3] %vm982, %v1082
      %v1085 = vld [vmem:[%s846] sm:$0x3]
      %s1087 = scalar_lea.vmem [#allocation1], 1
      %1088 = vst [vmem:[%s1087] ss:$2 sm:$0xff] %v1085
      %v1089 = vld.sshfl [vmem:[#allocation1] sm:$0xff pattern:$0x75643120]
      %1091 = vrot.lane.b32.xlu0 %v1089, 119
      %v1092 = vpop.permute.xlu0 %1091
      %1094 = vst.msk [vmem:[#allocation2 + $0x1c] sm:$0xc] %vm990, %v1092
      %v1095 = vld [vmem:[%s882] sm:$0x3]
      %1097 = vst [vmem:[#allocation1] ss:$2 sm:$0xff] %v1095
      %v1098 = vld.sshfl [vmem:[#allocation1] sm:$0xff pattern:$0x75643120]
      %1100 = vrot.lane.b32.xlu0 %v1098, 119
      %v1101 = vpop.permute.xlu0 %1100
      %1103 = vst.msk [vmem:[#allocation2 + $0x20] sm:$0x3] %vm982, %v1101
      %v1104 = vld [vmem:[%s846] sm:$0x3]
      %s1106 = scalar_lea.vmem [#allocation1], 1
      %1107 = vst [vmem:[%s1106] ss:$2 sm:$0xff] %v1104
      %v1108 = vld.sshfl [vmem:[#allocation1] sm:$0xff pattern:$0x75643120]
      %1110 = vrot.lane.b32.xlu0 %v1108, 118
      %v1111 = vpop.permute.xlu0 %1110
      %1113 = vst.msk [vmem:[#allocation2 + $0x20] sm:$0xc] %vm990, %v1111
      %v1114 = vld [vmem:[%s858] sm:$0x3]
      %1115 = vst.msk [vmem:[#allocation2 + $0x24] sm:$0x3] %vm982, %v1114
      %v1116 = vld [vmem:[%s895] sm:$0x3]
      %s1118 = scalar_lea.vmem [#allocation1], 1
      %1119 = vst [vmem:[%s1118] ss:$2 sm:$0xff] %v1116
      %v1120 = vld.sshfl [vmem:[#allocation1] sm:$0xff pattern:$0x75643120]
      %1122 = vst.msk [vmem:[#allocation2 + $0x24] sm:$0xc] %vm990, %v1120
      %v1123 = vld [vmem:[%s858] sm:$0x3]
      %1125 = vst [vmem:[#allocation1] ss:$2 sm:$0xff] %v1123
      %v1126 = vld.sshfl [vmem:[#allocation1] sm:$0xff pattern:$0x75643120]
      %1128 = vrot.lane.b32.xlu0 %v1126, 127
      %v1129 = vpop.permute.xlu0 %1128
      %1131 = vst.msk [vmem:[#allocation2 + $0x28] sm:$0x3] %vm982, %v1129
      %v1132 = vld [vmem:[%s932] sm:$0x3]
      %s1134 = scalar_lea.vmem [#allocation1], 1
      %1135 = vst [vmem:[%s1134] ss:$2 sm:$0xff] %v1132
      %v1136 = vld.sshfl [vmem:[#allocation1] sm:$0xff pattern:$0x75643120]
      %1138 = vst.msk [vmem:[#allocation2 + $0x28] sm:$0xc] %vm990, %v1136
      %v1139 = vld [vmem:[%s969] sm:$0x3]
      %1140 = vst.msk [vmem:[#allocation2 + $0x2c] sm:$0x3] %vm982, %v1139
      %v1141 = vld [vmem:[%s932] sm:$0x3]
      %s1143 = scalar_lea.vmem [#allocation1], 1
      %1144 = vst [vmem:[%s1143] ss:$2 sm:$0xff] %v1141
      %v1145 = vld.sshfl [vmem:[#allocation1] sm:$0xff pattern:$0x75643120]
      %1147 = vrot.lane.b32.xlu0 %v1145, 127
      %v1148 = vpop.permute.xlu0 %1147
      %1150 = vst.msk [vmem:[#allocation2 + $0x2c] sm:$0xc] %vm990, %v1148
      %v1151 = vld [vmem:[%s858] sm:$0x3]
      %1153 = vst [vmem:[#allocation1] ss:$2 sm:$0xff] %v1151
      %v1154 = vld.sshfl [vmem:[#allocation1] sm:$0xff pattern:$0x75643120]
      %1156 = vrot.lane.b32.xlu0 %v1154, 119
      %v1157 = vpop.permute.xlu0 %1156
      %1159 = vst.msk [vmem:[#allocation2 + $0x30] sm:$0x3] %vm982, %v1157
      %v1160 = vld [vmem:[%s895] sm:$0x3]
      %s1162 = scalar_lea.vmem [#allocation1], 1
      %1163 = vst [vmem:[%s1162] ss:$2 sm:$0xff] %v1160
      %v1164 = vld.sshfl [vmem:[#allocation1] sm:$0xff pattern:$0x75643120]
      %1166 = vrot.lane.b32.xlu0 %v1164, 119
      %v1167 = vpop.permute.xlu0 %1166
      %1169 = vst.msk [vmem:[#allocation2 + $0x30] sm:$0xc] %vm990, %v1167
      %v1170 = vld [vmem:[%s858] sm:$0x3]
      %1172 = vst [vmem:[#allocation1] ss:$2 sm:$0xff] %v1170
      %v1173 = vld.sshfl [vmem:[#allocation1] sm:$0xff pattern:$0x75643120]
      %1175 = vrot.lane.b32.xlu0 %v1173, 118
      %v1176 = vpop.permute.xlu0 %1175
      %1178 = vst.msk [vmem:[#allocation2 + $0x34] sm:$0x3] %vm982, %v1176
      %v1179 = vld [vmem:[%s12] sm:$0xf]
      %v1180 = vld [vmem:[#allocation2] sm:$0xf]
      %v1181 = vld [vmem:[#allocation2 + $0x4] sm:$0xf]
      %v1182 = vld [vmem:[#allocation2 + $0x8] sm:$0xf]
      %v1183 = vld [vmem:[#allocation2 + $0xc] sm:$0xf]
      %v1184 = vld [vmem:[#allocation2 + $0x10] sm:$0xf]
      %v1185 = vld [vmem:[#allocation2 + $0x14] sm:$0xf]
      %v1186 = vld [vmem:[#allocation2 + $0x18] sm:$0xf]
      %v1187 = vld [vmem:[#allocation2 + $0x1c] sm:$0xf]
      %v1188 = vld [vmem:[#allocation2 + $0x20] sm:$0xf]
      %v1189 = vld [vmem:[#allocation2 + $0x24] sm:$0xf]
      %v1190 = vld [vmem:[#allocation2 + $0x28] sm:$0xf]
      %v1191 = vld [vmem:[#allocation2 + $0x2c] sm:$0xf]
      %v1192 = vld [vmem:[#allocation2 + $0x30] sm:$0xf]
      %v1193 = vld [vmem:[#allocation2 + $0x34] sm:$0x3]
      %v1208 = vunpack.c.l.b16 %v1180
      %v1209 = vunpack.c.l.b16 %v1181
      %v1210 = vunpack.c.l.b16 %v1182
      %v1211 = vunpack.c.l.b16 %v1183
      %v1212 = vunpack.c.l.b16 %v1184
      %v1213 = vunpack.c.l.b16 %v1185
      %v1214 = vunpack.c.l.b16 %v1186
      %v1215 = vunpack.c.l.b16 %v1187
      %v1216 = vunpack.c.l.b16 %v1188
      %v1217 = vunpack.c.l.b16 %v1189
      %v1218 = vunpack.c.l.b16 %v1190
      %v1219 = vunpack.c.l.b16 %v1191
      %v1220 = vunpack.c.l.b16 %v1192
      %v1221 = vunpack.c.l.b16 %v1193
      %v1222 = vpack.c.b16 %v1209, %v1208
      %v1223 = vpack.c.b16 %v1211, %v1210
      %v1224 = vpack.c.b16 %v1213, %v1212
      %v1225 = vpack.c.b16 %v1215, %v1214
      %v1226 = vpack.c.b16 %v1217, %v1216
      %v1227 = vpack.c.b16 %v1219, %v1218
      %v1228 = vpack.c.b16 %v1221, %v1220
      %vm1235 = vcmask 883712
      %v1237 = vsel %vm1235, %v1179, 0
      %vm1239 = vcmask 1045504
      %v1241 = vsel %vm1239, %v1228, 0
      %1243 = vmatpush.bf16.msra.mxu0 0
      %1244 = vmatpush.bf16.msra.mxu0 %v1241
      %1245 = vmatpush.bf16.msra.mxu0 %v1227
      %1246 = vmatpush.bf16.msra.mxu0 %v1226
      %1247 = vmatpush.bf16.msra.mxu0 %v1225
      %1248 = vmatpush.bf16.msra.mxu0 %v1224
      %1249 = vmatpush.bf16.msra.mxu0 %v1223
      %1250 = vmatpush.bf16.msra.mxu0 %v1222
      %1251 = vmatmul.bf16.gmra.mxu0 %v1237
      %v1252 = vpop.f32.mrf.mxu0
      %v1253 = vadd.f32 0.0, %v1252
      %v1254 = vpop.f32.mrf.mxu0
      %1255 = vdwg.mxu0
      %vm1256 = vcmask 588800
      %1257 = vst.msk [vmem:[%s979] sm:$0xff] %vm1256, %v1253
      %p1258 = scmp.lt.s32.totalorder %s28, 1
      %s1259 = scalar_select %p1258, %s28, 1
      %p1260 = scmp.lt.s32.totalorder %s29, 7
      %s1261 = scalar_select %p1260, %s29, 7
      %s1262 = smul.addr %s1259, 8
      %s1263 = sadd.s32 %s1261, %s1262
      %s1264 = smul.addr %s1263, 8
      %s1265 = scalar_lea.vmem %s13, %s1264
      // Predicated region
      $region73: #{downsampling_forward.1} parent=71 // pred_check
        %p1266 = pneg %p453
      $region74: #{downsampling_forward.1} parent=71 // pred_check_branch
        %1268 = sbr.rel (%p1266) target = $region76
      $region75: #{downsampling_forward.1} parent=71 // pred_region
        _
      $region76: #{downsampling_forward.1} parent=71 // pred_fallthru
        _
    $region72: #{downsampling_forward.1} parent=5 // pred_fallthru
      _
    %p1269 = scmp.le.s32.totalorder 2, %s19
    // Predicated region
    $region77: #{downsampling_forward.1} parent=5 // pred_check
      %p1270 = pneg %p1269
    $region78: #{downsampling_forward.1} parent=5 // pred_check_branch
      %1272 = sbr.rel (%p1270) target = $region80
    $region79: #{downsampling_forward.1} parent=5 // pred_region
      %s1273 = ssub.s32 %s19, 2
      // Predicated region
      $region81: #{downsampling_forward.1} parent=79 // pred_check
        %p1274 = pneg %p459
      $region82: #{downsampling_forward.1} parent=79 // pred_check_branch
        %1276 = sbr.rel (%p1274) target = $region84
      $region83: #{downsampling_forward.1} parent=79 // pred_region
        %p1277 = scmp.lt.s32.totalorder %s30, 1
        %s1278 = scalar_select %p1277, %s30, 1
        %p1279 = scmp.lt.s32.totalorder %s31, 7
        %s1280 = scalar_select %p1279, %s31, 7
        %s1281 = smul.addr %s1278, 8
        %s1282 = sadd.s32 %s1280, %s1281
        %s1283 = smul.addr %s1282, 8
        %s1284 = scalar_lea.vmem %s13, %s1283
      $region84: #{downsampling_forward.1} parent=79 // pred_fallthru
        _
    $region80: #{downsampling_forward.1} parent=5 // pred_fallthru
      _
  $region6: #{downsampling_forward.1} parent=0 // loop_footer
    %s23 = sadd.s32 1, %s19
  $region7: #{downsampling_forward.1} parent=0 // loop_footer_branch
    %18 = sbr.rel target = $region3
  $region8: #{downsampling_forward.1} parent=0 // loop_exit
    _

</llo_original>
